<compile_context>
chip_gen: v6e
topology: v6e:2x2x1
jax: 0.10.0
libtpu: 0.0.40
codegen_flags: <defaults>
</compile_context>

<pallas_src>
import functools

import jax
import jax.numpy as jnp
from jax import lax
from jax.experimental import pallas as pl
from jax.experimental.pallas import tpu as pltpu

_LANE = 128      # lane width of the repacked slab
_TM_MAX = 512    # rows per grid step (512*128 f32 = 256 KiB per input per step)


def _ghmr_kernel(pred_ref, target_ref, lw_ref, out_ref,
                 cnt_ref, lsum_ref, lwsum_ref, *,
                 mu: float, bins: int, loss_weight: float):
    t = pl.program_id(0)

    @pl.when(t == 0)
    def _init():
        cnt_ref[...] = jnp.zeros_like(cnt_ref)
        lsum_ref[...] = jnp.zeros_like(lsum_ref)
        lwsum_ref[...] = jnp.zeros_like(lwsum_ref)

    pred = pred_ref[...]
    target = target_ref[...]
    lw = lw_ref[...]
    tm, lane = pred.shape

    def fold8(x):
        # (tm, lane) -> (8, lane) with plain vreg-wise VPU adds (no XLU).
        return jnp.sum(x.reshape(tm // 8, 8, lane), axis=0)

    diff = pred - target
    d2 = diff * diff + mu * mu
    inv = lax.rsqrt(d2)                 # single transcendental per element
    loss = d2 * inv - mu                # == sqrt(diff^2 + mu^2) - mu
    g = jnp.abs(diff) * inv             # == |diff| / sqrt(diff^2 + mu^2), in [0, 1)

    valid = lw > 0.0
    lwsum_ref[...] = lwsum_ref[...] + fold8(lw)

    # Interior edges only: edge[0] = 0 (g >= 0 always) and edge[bins] = 1000
    # (g < 1 strictly for mu > 0) need no comparison.
    ge = [g >= (float(i) / float(bins)) for i in range(1, bins)]
    for i in range(bins):
        m = valid
        if i > 0:
            m = m & ge[i - 1]
        if i < bins - 1:
            m = m & jnp.logical_not(ge[i])
        mf = m.astype(jnp.float32)
        cnt_ref[i] = cnt_ref[i] + fold8(mf)
        lsum_ref[i] = lsum_ref[i] + fold8(loss * mf)

    # TODO(synk): momentum > 0 (EMA acc_sum state across calls) not implemented;
    # this kernel covers the default momentum = 0 path.
    # TODO(synk): optional 2-TensorCore split (per-core partial bin stats +
    # tiny JAX combine) for v7x large-N throughput not implemented.

    @pl.when(t == pl.num_programs(0) - 1)
    def _finalize():
        tot = jnp.maximum(jnp.sum(lwsum_ref[...]), 1.0)
        n_nonempty = jnp.float32(0.0)
        acc = jnp.float32(0.0)
        for i in range(bins):
            c = jnp.sum(cnt_ref[i])
            s = jnp.sum(lsum_ref[i])
            ne = c > 0.0
            n_nonempty = n_nonempty + jnp.where(ne, 1.0, 0.0)
            # weights[bin i] = tot / count_i, applied to every element of the
            # bin -> contributes (tot / count_i) * sum(loss in bin i).
            acc = acc + jnp.where(ne, (tot / jnp.maximum(c, 1.0)) * s, 0.0)
        total = acc / jnp.maximum(n_nonempty, 1.0) / tot
        out_ref[0, 0] = total * loss_weight


def ghmr_loss(pred, target, label_weight, *,
              mu: float = 0.02, bins: int = 10, loss_weight: float = 1.0):
    assert pred.shape == target.shape == label_weight.shape
    pred = pred.astype(jnp.float32).reshape(-1)
    target = target.astype(jnp.float32).reshape(-1)
    lw = label_weight.astype(jnp.float32).reshape(-1)
    e = pred.shape[0]

    granule = 8 * _LANE                    # one (8,128) f32 vreg tile
    max_tile = _TM_MAX * _LANE
    if e <= max_tile:
        p = pl.cdiv(e, granule) * granule
        tm = p // _LANE
        grid_t = 1
    else:
        p = pl.cdiv(e, max_tile) * max_tile
        tm = _TM_MAX
        grid_t = p // max_tile

    pad = p - e
    if pad:
        pred = jnp.pad(pred, (0, pad))
        target = jnp.pad(target, (0, pad))
        lw = jnp.pad(lw, (0, pad))         # label_weight == 0 -> inert

    rows = p // _LANE
    pred2 = pred.reshape(rows, _LANE)
    target2 = target.reshape(rows, _LANE)
    lw2 = lw.reshape(rows, _LANE)

    kernel = functools.partial(
        _ghmr_kernel, mu=float(mu), bins=int(bins), loss_weight=float(loss_weight))

    out = pl.pallas_call(
        kernel,
        out_shape=jax.ShapeDtypeStruct((1, 1), jnp.float32),
        grid_spec=pltpu.PrefetchScalarGridSpec(
            num_scalar_prefetch=0,
            grid=(grid_t,),
            in_specs=[
                pl.BlockSpec((tm, _LANE), lambda t: (t, 0)),
                pl.BlockSpec((tm, _LANE), lambda t: (t, 0)),
                pl.BlockSpec((tm, _LANE), lambda t: (t, 0)),
            ],
            out_specs=pl.BlockSpec(memory_space=pltpu.MemorySpace.SMEM),
            scratch_shapes=[
                pltpu.VMEM((bins, 8, _LANE), jnp.float32),   # per-bin counts
                pltpu.VMEM((bins, 8, _LANE), jnp.float32),   # per-bin loss sums
                pltpu.VMEM((8, _LANE), jnp.float32),         # sum(label_weight)
            ],
        ),
        compiler_params=pltpu.CompilerParams(
            dimension_semantics=("arbitrary",),
            vmem_limit_bytes=32 * 1024 * 1024,
        ),
        cost_estimate=pl.CostEstimate(
            flops=p * (10 + 6 * int(bins)),
            transcendentals=p,
            bytes_accessed=3 * p * 4 + 4,
        ),
    )(pred2, target2, lw2)
    return out[0, 0]


def _ghmr_reference(pred, target, label_weight, *,
                    mu=0.02, bins=10, loss_weight=1.0):
    """Pure-JAX reference mirroring the PyTorch forward (momentum = 0)."""
    diff = pred - target
    sqrt_d2 = jnp.sqrt(diff * diff + mu * mu)
    loss = sqrt_d2 - mu
    g = jnp.abs(diff / sqrt_d2)
    valid = label_weight > 0
    tot = jnp.maximum(jnp.sum(label_weight), 1.0)
    edges = [float(i) / bins for i in range(bins)] + [1000.0]
    weights = jnp.zeros_like(g)
    n = 0.0
    for i in range(bins):
        inds = (g >= edges[i]) & (g < edges[i + 1]) & valid
        num = jnp.sum(inds.astype(jnp.float32))
        ne = num > 0
        n = n + jnp.where(ne, 1.0, 0.0)
        weights = jnp.where(inds,
                            jnp.where(ne, tot / jnp.maximum(num, 1.0), 0.0),
                            weights)
    weights = weights / jnp.maximum(n, 1.0)
    return jnp.sum(loss * weights) / tot * loss_weight


if __name__ == "__main__":
    key = jax.random.PRNGKey(0)
    k1, k2, k3 = jax.random.split(key, 3)

    N, C = 16, 4                      # [batch_num, 4] box-regression predictions
    pred = jax.random.normal(k1, (N, C), dtype=jnp.float32)
    target = jax.random.normal(k2, (N, C), dtype=jnp.float32)
    label_weight = (jax.random.uniform(k3, (N, C)) > 0.3).astype(jnp.float32)

    out = ghmr_loss(pred, target, label_weight, mu=0.02, bins=10, loss_weight=1.0)
    out = jax.block_until_ready(out)

    ref = _ghmr_reference(pred, target, label_weight,
                          mu=0.02, bins=10, loss_weight=1.0)
    assert jnp.isfinite(out), "non-finite loss"
    assert jnp.allclose(out, ref, rtol=1e-4, atol=1e-5), (out, ref)

    print("KERNEL_OK")
</pallas_src>

<mosaic_0001>
module attributes {stable_mosaic.version = 11 : i64} {
  func.func @_ghmr_kernel(%arg0: i32, %arg1: memref<8x128xf32, #tpu.memory_space<vmem>>, %arg2: memref<8x128xf32, #tpu.memory_space<vmem>>, %arg3: memref<8x128xf32, #tpu.memory_space<vmem>>, %arg4: memref<1x1xf32, #tpu.memory_space<smem>>, %arg5: memref<10x8x128xf32, #tpu.memory_space<vmem>>, %arg6: memref<10x8x128xf32, #tpu.memory_space<vmem>>, %arg7: memref<8x128xf32, #tpu.memory_space<vmem>>) attributes {dimension_semantics = [#tpu.dimension_semantics<arbitrary>], iteration_bounds = array<i64: 1>, scalar_prefetch = 0 : i64, scratch_operands = 3 : i64, tpu.core_type = #tpu.core_type<tc>, window_params = [{transform_indices = @transform_0, window_bounds = array<i64: 8, 128>}, {transform_indices = @transform_1, window_bounds = array<i64: 8, 128>}, {transform_indices = @transform_2, window_bounds = array<i64: 8, 128>}, {transform_indices = @transform_3, window_bounds = array<i64: 1, 1>}]} {
    %c0_i32 = arith.constant 0 : i32
    %0 = arith.cmpi eq, %arg0, %c0_i32 : i32
    %1 = arith.extui %0 : i1 to i32
    %c0_i32_0 = arith.constant 0 : i32
    %2 = arith.cmpi ne, %1, %c0_i32_0 : i32
    scf.if %2 {
      %cst_164 = arith.constant 0.000000e+00 : f32
      %261 = vector.broadcast %cst_164 : f32 to vector<10x8x128xf32>
      %c0_165 = arith.constant 0 : index
      %c0_166 = arith.constant 0 : index
      %c0_167 = arith.constant 0 : index
      %262 = vector.load %arg5[%c0_165, %c0_166, %c0_167] : memref<10x8x128xf32, #tpu.memory_space<vmem>>, vector<10x8x128xf32>
      tpu.vector_store %arg5[%c0_165, %c0_166, %c0_167], %261 {strides = array<i32>} : memref<10x8x128xf32, #tpu.memory_space<vmem>>, vector<10x8x128xf32>,
      %cst_168 = arith.constant 0.000000e+00 : f32
      %263 = vector.broadcast %cst_168 : f32 to vector<10x8x128xf32>
      %c0_169 = arith.constant 0 : index
      %c0_170 = arith.constant 0 : index
      %c0_171 = arith.constant 0 : index
      %264 = vector.load %arg6[%c0_169, %c0_170, %c0_171] : memref<10x8x128xf32, #tpu.memory_space<vmem>>, vector<10x8x128xf32>
      tpu.vector_store %arg6[%c0_169, %c0_170, %c0_171], %263 {strides = array<i32>} : memref<10x8x128xf32, #tpu.memory_space<vmem>>, vector<10x8x128xf32>,
      %cst_172 = arith.constant 0.000000e+00 : f32
      %265 = vector.broadcast %cst_172 : f32 to vector<8x128xf32>
      %c0_173 = arith.constant 0 : index
      %c0_174 = arith.constant 0 : index
      %266 = vector.load %arg7[%c0_173, %c0_174] : memref<8x128xf32, #tpu.memory_space<vmem>>, vector<8x128xf32>
      tpu.vector_store %arg7[%c0_173, %c0_174], %265 {strides = array<i32>} : memref<8x128xf32, #tpu.memory_space<vmem>>, vector<8x128xf32>,
    } else {
    }
    %c0 = arith.constant 0 : index
    %c0_1 = arith.constant 0 : index
    %3 = vector.load %arg1[%c0, %c0_1] : memref<8x128xf32, #tpu.memory_space<vmem>>, vector<8x128xf32>
    %c0_2 = arith.constant 0 : index
    %c0_3 = arith.constant 0 : index
    %4 = vector.load %arg2[%c0_2, %c0_3] : memref<8x128xf32, #tpu.memory_space<vmem>>, vector<8x128xf32>
    %c0_4 = arith.constant 0 : index
    %c0_5 = arith.constant 0 : index
    %5 = vector.load %arg3[%c0_4, %c0_5] : memref<8x128xf32, #tpu.memory_space<vmem>>, vector<8x128xf32>
    %6 = arith.subf %3, %4 : vector<8x128xf32>
    %7 = arith.mulf %6, %6 : vector<8x128xf32>
    %cst = arith.constant 4.000000e-04 : f32
    %8 = vector.broadcast %cst : f32 to vector<8x128xf32>
    %9 = arith.addf %7, %8 : vector<8x128xf32>
    %10 = math.rsqrt %9 : vector<8x128xf32>
    %11 = arith.mulf %9, %10 : vector<8x128xf32>
    %cst_6 = arith.constant 2.000000e-02 : f32
    %12 = vector.broadcast %cst_6 : f32 to vector<8x128xf32>
    %13 = arith.subf %11, %12 : vector<8x128xf32>
    %14 = math.absf %6 : vector<8x128xf32>
    %15 = arith.mulf %14, %10 : vector<8x128xf32>
    %cst_7 = arith.constant 0.000000e+00 : f32
    %16 = vector.broadcast %cst_7 : f32 to vector<8x128xf32>
    %17 = arith.cmpf ogt, %5, %16 : vector<8x128xf32>
    %c0_8 = arith.constant 0 : index
    %c0_9 = arith.constant 0 : index
    %18 = vector.load %arg7[%c0_8, %c0_9] : memref<8x128xf32, #tpu.memory_space<vmem>>, vector<8x128xf32>
    %19 = vector.shape_cast %5 : vector<8x128xf32> to vector<1x8x128xf32>
    %cst_10 = arith.constant dense<0.000000e+00> : vector<8x128xf32>
    %20 = vector.multi_reduction <add>, %19, %cst_10 [0] : vector<1x8x128xf32> to vector<8x128xf32>
    %21 = arith.addf %18, %20 : vector<8x128xf32>
    %c0_11 = arith.constant 0 : index
    %c0_12 = arith.constant 0 : index
    %22 = vector.load %arg7[%c0_11, %c0_12] : memref<8x128xf32, #tpu.memory_space<vmem>>, vector<8x128xf32>
    tpu.vector_store %arg7[%c0_11, %c0_12], %21 {strides = array<i32>} : memref<8x128xf32, #tpu.memory_space<vmem>>, vector<8x128xf32>,
    %cst_13 = arith.constant 1.000000e-01 : f32
    %23 = vector.broadcast %cst_13 : f32 to vector<8x128xf32>
    %24 = arith.cmpf oge, %15, %23 : vector<8x128xf32>
    %cst_14 = arith.constant 2.000000e-01 : f32
    %25 = vector.broadcast %cst_14 : f32 to vector<8x128xf32>
    %26 = arith.cmpf oge, %15, %25 : vector<8x128xf32>
    %cst_15 = arith.constant 3.000000e-01 : f32
    %27 = vector.broadcast %cst_15 : f32 to vector<8x128xf32>
    %28 = arith.cmpf oge, %15, %27 : vector<8x128xf32>
    %cst_16 = arith.constant 4.000000e-01 : f32
    %29 = vector.broadcast %cst_16 : f32 to vector<8x128xf32>
    %30 = arith.cmpf oge, %15, %29 : vector<8x128xf32>
    %cst_17 = arith.constant 5.000000e-01 : f32
    %31 = vector.broadcast %cst_17 : f32 to vector<8x128xf32>
    %32 = arith.cmpf oge, %15, %31 : vector<8x128xf32>
    %cst_18 = arith.constant 6.000000e-01 : f32
    %33 = vector.broadcast %cst_18 : f32 to vector<8x128xf32>
    %34 = arith.cmpf oge, %15, %33 : vector<8x128xf32>
    %cst_19 = arith.constant 0.699999988 : f32
    %35 = vector.broadcast %cst_19 : f32 to vector<8x128xf32>
    %36 = arith.cmpf oge, %15, %35 : vector<8x128xf32>
    %cst_20 = arith.constant 8.000000e-01 : f32
    %37 = vector.broadcast %cst_20 : f32 to vector<8x128xf32>
    %38 = arith.cmpf oge, %15, %37 : vector<8x128xf32>
    %cst_21 = arith.constant 0.899999976 : f32
    %39 = vector.broadcast %cst_21 : f32 to vector<8x128xf32>
    %40 = arith.cmpf oge, %15, %39 : vector<8x128xf32>
    %cst_22 = arith.constant dense<true> : vector<8x128xi1>
    %41 = arith.xori %24, %cst_22 : vector<8x128xi1>
    %42 = arith.andi %17, %41 : vector<8x128xi1>
    %43 = arith.extui %42 : vector<8x128xi1> to vector<8x128xi32>
    %44 = arith.sitofp %43 : vector<8x128xi32> to vector<8x128xf32>
    %c0_23 = arith.constant 0 : index
    %c0_24 = arith.constant 0 : index
    %c0_25 = arith.constant 0 : index
    %45 = vector.load %arg5[%c0_23, %c0_24, %c0_25] : memref<10x8x128xf32, #tpu.memory_space<vmem>>, vector<1x8x128xf32>
    %46 = vector.shape_cast %45 : vector<1x8x128xf32> to vector<8x128xf32>
    %47 = vector.shape_cast %44 : vector<8x128xf32> to vector<1x8x128xf32>
    %cst_26 = arith.constant dense<0.000000e+00> : vector<8x128xf32>
    %48 = vector.multi_reduction <add>, %47, %cst_26 [0] : vector<1x8x128xf32> to vector<8x128xf32>
    %49 = arith.addf %46, %48 : vector<8x128xf32>
    %c0_27 = arith.constant 0 : index
    %c0_28 = arith.constant 0 : index
    %c0_29 = arith.constant 0 : index
    %50 = vector.load %arg5[%c0_27, %c0_28, %c0_29] : memref<10x8x128xf32, #tpu.memory_space<vmem>>, vector<1x8x128xf32>
    %51 = vector.shape_cast %50 : vector<1x8x128xf32> to vector<8x128xf32>
    %52 = vector.shape_cast %49 : vector<8x128xf32> to vector<1x8x128xf32>
    tpu.vector_store %arg5[%c0_27, %c0_28, %c0_29], %52 {strides = array<i32>} : memref<10x8x128xf32, #tpu.memory_space<vmem>>, vector<1x8x128xf32>,
    %c0_30 = arith.constant 0 : index
    %c0_31 = arith.constant 0 : index
    %c0_32 = arith.constant 0 : index
    %53 = vector.load %arg6[%c0_30, %c0_31, %c0_32] : memref<10x8x128xf32, #tpu.memory_space<vmem>>, vector<1x8x128xf32>
    %54 = vector.shape_cast %53 : vector<1x8x128xf32> to vector<8x128xf32>
    %55 = arith.mulf %13, %44 : vector<8x128xf32>
    %56 = vector.shape_cast %55 : vector<8x128xf32> to vector<1x8x128xf32>
    %cst_33 = arith.constant dense<0.000000e+00> : vector<8x128xf32>
    %57 = vector.multi_reduction <add>, %56, %cst_33 [0] : vector<1x8x128xf32> to vector<8x128xf32>
    %58 = arith.addf %54, %57 : vector<8x128xf32>
    %c0_34 = arith.constant 0 : index
    %c0_35 = arith.constant 0 : index
    %c0_36 = arith.constant 0 : index
    %59 = vector.load %arg6[%c0_34, %c0_35, %c0_36] : memref<10x8x128xf32, #tpu.memory_space<vmem>>, vector<1x8x128xf32>
    %60 = vector.shape_cast %59 : vector<1x8x128xf32> to vector<8x128xf32>
    %61 = vector.shape_cast %58 : vector<8x128xf32> to vector<1x8x128xf32>
    tpu.vector_store %arg6[%c0_34, %c0_35, %c0_36], %61 {strides = array<i32>} : memref<10x8x128xf32, #tpu.memory_space<vmem>>, vector<1x8x128xf32>,
    %62 = arith.andi %17, %24 : vector<8x128xi1>
    %cst_37 = arith.constant dense<true> : vector<8x128xi1>
    %63 = arith.xori %26, %cst_37 : vector<8x128xi1>
    %64 = arith.andi %62, %63 : vector<8x128xi1>
    %65 = arith.extui %64 : vector<8x128xi1> to vector<8x128xi32>
    %66 = arith.sitofp %65 : vector<8x128xi32> to vector<8x128xf32>
    %c1 = arith.constant 1 : index
    %c0_38 = arith.constant 0 : index
    %c0_39 = arith.constant 0 : index
    %67 = vector.load %arg5[%c1, %c0_38, %c0_39] : memref<10x8x128xf32, #tpu.memory_space<vmem>>, vector<1x8x128xf32>
    %68 = vector.shape_cast %67 : vector<1x8x128xf32> to vector<8x128xf32>
    %69 = vector.shape_cast %66 : vector<8x128xf32> to vector<1x8x128xf32>
    %cst_40 = arith.constant dense<0.000000e+00> : vector<8x128xf32>
    %70 = vector.multi_reduction <add>, %69, %cst_40 [0] : vector<1x8x128xf32> to vector<8x128xf32>
    %71 = arith.addf %68, %70 : vector<8x128xf32>
    %c1_41 = arith.constant 1 : index
    %c0_42 = arith.constant 0 : index
    %c0_43 = arith.constant 0 : index
    %72 = vector.load %arg5[%c1_41, %c0_42, %c0_43] : memref<10x8x128xf32, #tpu.memory_space<vmem>>, vector<1x8x128xf32>
    %73 = vector.shape_cast %72 : vector<1x8x128xf32> to vector<8x128xf32>
    %74 = vector.shape_cast %71 : vector<8x128xf32> to vector<1x8x128xf32>
    tpu.vector_store %arg5[%c1_41, %c0_42, %c0_43], %74 {strides = array<i32>} : memref<10x8x128xf32, #tpu.memory_space<vmem>>, vector<1x8x128xf32>,
    %c1_44 = arith.constant 1 : index
    %c0_45 = arith.constant 0 : index
    %c0_46 = arith.constant 0 : index
    %75 = vector.load %arg6[%c1_44, %c0_45, %c0_46] : memref<10x8x128xf32, #tpu.memory_space<vmem>>, vector<1x8x128xf32>
    %76 = vector.shape_cast %75 : vector<1x8x128xf32> to vector<8x128xf32>
    %77 = arith.mulf %13, %66 : vector<8x128xf32>
    %78 = vector.shape_cast %77 : vector<8x128xf32> to vector<1x8x128xf32>
    %cst_47 = arith.constant dense<0.000000e+00> : vector<8x128xf32>
    %79 = vector.multi_reduction <add>, %78, %cst_47 [0] : vector<1x8x128xf32> to vector<8x128xf32>
    %80 = arith.addf %76, %79 : vector<8x128xf32>
    %c1_48 = arith.constant 1 : index
    %c0_49 = arith.constant 0 : index
    %c0_50 = arith.constant 0 : index
    %81 = vector.load %arg6[%c1_48, %c0_49, %c0_50] : memref<10x8x128xf32, #tpu.memory_space<vmem>>, vector<1x8x128xf32>
    %82 = vector.shape_cast %81 : vector<1x8x128xf32> to vector<8x128xf32>
    %83 = vector.shape_cast %80 : vector<8x128xf32> to vector<1x8x128xf32>
    tpu.vector_store %arg6[%c1_48, %c0_49, %c0_50], %83 {strides = array<i32>} : memref<10x8x128xf32, #tpu.memory_space<vmem>>, vector<1x8x128xf32>,
    %84 = arith.andi %17, %26 : vector<8x128xi1>
    %cst_51 = arith.constant dense<true> : vector<8x128xi1>
    %85 = arith.xori %28, %cst_51 : vector<8x128xi1>
    %86 = arith.andi %84, %85 : vector<8x128xi1>
    %87 = arith.extui %86 : vector<8x128xi1> to vector<8x128xi32>
    %88 = arith.sitofp %87 : vector<8x128xi32> to vector<8x128xf32>
    %c2 = arith.constant 2 : index
    %c0_52 = arith.constant 0 : index
    %c0_53 = arith.constant 0 : index
    %89 = vector.load %arg5[%c2, %c0_52, %c0_53] : memref<10x8x128xf32, #tpu.memory_space<vmem>>, vector<1x8x128xf32>
    %90 = vector.shape_cast %89 : vector<1x8x128xf32> to vector<8x128xf32>
    %91 = vector.shape_cast %88 : vector<8x128xf32> to vector<1x8x128xf32>
    %cst_54 = arith.constant dense<0.000000e+00> : vector<8x128xf32>
    %92 = vector.multi_reduction <add>, %91, %cst_54 [0] : vector<1x8x128xf32> to vector<8x128xf32>
    %93 = arith.addf %90, %92 : vector<8x128xf32>
    %c2_55 = arith.constant 2 : index
    %c0_56 = arith.constant 0 : index
    %c0_57 = arith.constant 0 : index
    %94 = vector.load %arg5[%c2_55, %c0_56, %c0_57] : memref<10x8x128xf32, #tpu.memory_space<vmem>>, vector<1x8x128xf32>
    %95 = vector.shape_cast %94 : vector<1x8x128xf32> to vector<8x128xf32>
    %96 = vector.shape_cast %93 : vector<8x128xf32> to vector<1x8x128xf32>
    tpu.vector_store %arg5[%c2_55, %c0_56, %c0_57], %96 {strides = array<i32>} : memref<10x8x128xf32, #tpu.memory_space<vmem>>, vector<1x8x128xf32>,
    %c2_58 = arith.constant 2 : index
    %c0_59 = arith.constant 0 : index
    %c0_60 = arith.constant 0 : index
    %97 = vector.load %arg6[%c2_58, %c0_59, %c0_60] : memref<10x8x128xf32, #tpu.memory_space<vmem>>, vector<1x8x128xf32>
    %98 = vector.shape_cast %97 : vector<1x8x128xf32> to vector<8x128xf32>
    %99 = arith.mulf %13, %88 : vector<8x128xf32>
    %100 = vector.shape_cast %99 : vector<8x128xf32> to vector<1x8x128xf32>
    %cst_61 = arith.constant dense<0.000000e+00> : vector<8x128xf32>
    %101 = vector.multi_reduction <add>, %100, %cst_61 [0] : vector<1x8x128xf32> to vector<8x128xf32>
    %102 = arith.addf %98, %101 : vector<8x128xf32>
    %c2_62 = arith.constant 2 : index
    %c0_63 = arith.constant 0 : index
    %c0_64 = arith.constant 0 : index
    %103 = vector.load %arg6[%c2_62, %c0_63, %c0_64] : memref<10x8x128xf32, #tpu.memory_space<vmem>>, vector<1x8x128xf32>
    %104 = vector.shape_cast %103 : vector<1x8x128xf32> to vector<8x128xf32>
    %105 = vector.shape_cast %102 : vector<8x128xf32> to vector<1x8x128xf32>
    tpu.vector_store %arg6[%c2_62, %c0_63, %c0_64], %105 {strides = array<i32>} : memref<10x8x128xf32, #tpu.memory_space<vmem>>, vector<1x8x128xf32>,
    %106 = arith.andi %17, %28 : vector<8x128xi1>
    %cst_65 = arith.constant dense<true> : vector<8x128xi1>
    %107 = arith.xori %30, %cst_65 : vector<8x128xi1>
    %108 = arith.andi %106, %107 : vector<8x128xi1>
    %109 = arith.extui %108 : vector<8x128xi1> to vector<8x128xi32>
    %110 = arith.sitofp %109 : vector<8x128xi32> to vector<8x128xf32>
    %c3 = arith.constant 3 : index
    %c0_66 = arith.constant 0 : index
    %c0_67 = arith.constant 0 : index
    %111 = vector.load %arg5[%c3, %c0_66, %c0_67] : memref<10x8x128xf32, #tpu.memory_space<vmem>>, vector<1x8x128xf32>
    %112 = vector.shape_cast %111 : vector<1x8x128xf32> to vector<8x128xf32>
    %113 = vector.shape_cast %110 : vector<8x128xf32> to vector<1x8x128xf32>
    %cst_68 = arith.constant dense<0.000000e+00> : vector<8x128xf32>
    %114 = vector.multi_reduction <add>, %113, %cst_68 [0] : vector<1x8x128xf32> to vector<8x128xf32>
    %115 = arith.addf %112, %114 : vector<8x128xf32>
    %c3_69 = arith.constant 3 : index
    %c0_70 = arith.constant 0 : index
    %c0_71 = arith.constant 0 : index
    %116 = vector.load %arg5[%c3_69, %c0_70, %c0_71] : memref<10x8x128xf32, #tpu.memory_space<vmem>>, vector<1x8x128xf32>
    %117 = vector.shape_cast %116 : vector<1x8x128xf32> to vector<8x128xf32>
    %118 = vector.shape_cast %115 : vector<8x128xf32> to vector<1x8x128xf32>
    tpu.vector_store %arg5[%c3_69, %c0_70, %c0_71], %118 {strides = array<i32>} : memref<10x8x128xf32, #tpu.memory_space<vmem>>, vector<1x8x128xf32>,
    %c3_72 = arith.constant 3 : index
    %c0_73 = arith.constant 0 : index
    %c0_74 = arith.constant 0 : index
    %119 = vector.load %arg6[%c3_72, %c0_73, %c0_74] : memref<10x8x128xf32, #tpu.memory_space<vmem>>, vector<1x8x128xf32>
    %120 = vector.shape_cast %119 : vector<1x8x128xf32> to vector<8x128xf32>
    %121 = arith.mulf %13, %110 : vector<8x128xf32>
    %122 = vector.shape_cast %121 : vector<8x128xf32> to vector<1x8x128xf32>
    %cst_75 = arith.constant dense<0.000000e+00> : vector<8x128xf32>
    %123 = vector.multi_reduction <add>, %122, %cst_75 [0] : vector<1x8x128xf32> to vector<8x128xf32>
    %124 = arith.addf %120, %123 : vector<8x128xf32>
    %c3_76 = arith.constant 3 : index
    %c0_77 = arith.constant 0 : index
    %c0_78 = arith.constant 0 : index
    %125 = vector.load %arg6[%c3_76, %c0_77, %c0_78] : memref<10x8x128xf32, #tpu.memory_space<vmem>>, vector<1x8x128xf32>
    %126 = vector.shape_cast %125 : vector<1x8x128xf32> to vector<8x128xf32>
    %127 = vector.shape_cast %124 : vector<8x128xf32> to vector<1x8x128xf32>
    tpu.vector_store %arg6[%c3_76, %c0_77, %c0_78], %127 {strides = array<i32>} : memref<10x8x128xf32, #tpu.memory_space<vmem>>, vector<1x8x128xf32>,
    %128 = arith.andi %17, %30 : vector<8x128xi1>
    %cst_79 = arith.constant dense<true> : vector<8x128xi1>
    %129 = arith.xori %32, %cst_79 : vector<8x128xi1>
    %130 = arith.andi %128, %129 : vector<8x128xi1>
    %131 = arith.extui %130 : vector<8x128xi1> to vector<8x128xi32>
    %132 = arith.sitofp %131 : vector<8x128xi32> to vector<8x128xf32>
    %c4 = arith.constant 4 : index
    %c0_80 = arith.constant 0 : index
    %c0_81 = arith.constant 0 : index
    %133 = vector.load %arg5[%c4, %c0_80, %c0_81] : memref<10x8x128xf32, #tpu.memory_space<vmem>>, vector<1x8x128xf32>
    %134 = vector.shape_cast %133 : vector<1x8x128xf32> to vector<8x128xf32>
    %135 = vector.shape_cast %132 : vector<8x128xf32> to vector<1x8x128xf32>
    %cst_82 = arith.constant dense<0.000000e+00> : vector<8x128xf32>
    %136 = vector.multi_reduction <add>, %135, %cst_82 [0] : vector<1x8x128xf32> to vector<8x128xf32>
    %137 = arith.addf %134, %136 : vector<8x128xf32>
    %c4_83 = arith.constant 4 : index
    %c0_84 = arith.constant 0 : index
    %c0_85 = arith.constant 0 : index
    %138 = vector.load %arg5[%c4_83, %c0_84, %c0_85] : memref<10x8x128xf32, #tpu.memory_space<vmem>>, vector<1x8x128xf32>
    %139 = vector.shape_cast %138 : vector<1x8x128xf32> to vector<8x128xf32>
    %140 = vector.shape_cast %137 : vector<8x128xf32> to vector<1x8x128xf32>
    tpu.vector_store %arg5[%c4_83, %c0_84, %c0_85], %140 {strides = array<i32>} : memref<10x8x128xf32, #tpu.memory_space<vmem>>, vector<1x8x128xf32>,
    %c4_86 = arith.constant 4 : index
    %c0_87 = arith.constant 0 : index
    %c0_88 = arith.constant 0 : index
    %141 = vector.load %arg6[%c4_86, %c0_87, %c0_88] : memref<10x8x128xf32, #tpu.memory_space<vmem>>, vector<1x8x128xf32>
    %142 = vector.shape_cast %141 : vector<1x8x128xf32> to vector<8x128xf32>
    %143 = arith.mulf %13, %132 : vector<8x128xf32>
    %144 = vector.shape_cast %143 : vector<8x128xf32> to vector<1x8x128xf32>
    %cst_89 = arith.constant dense<0.000000e+00> : vector<8x128xf32>
    %145 = vector.multi_reduction <add>, %144, %cst_89 [0] : vector<1x8x128xf32> to vector<8x128xf32>
    %146 = arith.addf %142, %145 : vector<8x128xf32>
    %c4_90 = arith.constant 4 : index
    %c0_91 = arith.constant 0 : index
    %c0_92 = arith.constant 0 : index
    %147 = vector.load %arg6[%c4_90, %c0_91, %c0_92] : memref<10x8x128xf32, #tpu.memory_space<vmem>>, vector<1x8x128xf32>
    %148 = vector.shape_cast %147 : vector<1x8x128xf32> to vector<8x128xf32>
    %149 = vector.shape_cast %146 : vector<8x128xf32> to vector<1x8x128xf32>
    tpu.vector_store %arg6[%c4_90, %c0_91, %c0_92], %149 {strides = array<i32>} : memref<10x8x128xf32, #tpu.memory_space<vmem>>, vector<1x8x128xf32>,
    %150 = arith.andi %17, %32 : vector<8x128xi1>
    %cst_93 = arith.constant dense<true> : vector<8x128xi1>
    %151 = arith.xori %34, %cst_93 : vector<8x128xi1>
    %152 = arith.andi %150, %151 : vector<8x128xi1>
    %153 = arith.extui %152 : vector<8x128xi1> to vector<8x128xi32>
    %154 = arith.sitofp %153 : vector<8x128xi32> to vector<8x128xf32>
    %c5 = arith.constant 5 : index
    %c0_94 = arith.constant 0 : index
    %c0_95 = arith.constant 0 : index
    %155 = vector.load %arg5[%c5, %c0_94, %c0_95] : memref<10x8x128xf32, #tpu.memory_space<vmem>>, vector<1x8x128xf32>
    %156 = vector.shape_cast %155 : vector<1x8x128xf32> to vector<8x128xf32>
    %157 = vector.shape_cast %154 : vector<8x128xf32> to vector<1x8x128xf32>
    %cst_96 = arith.constant dense<0.000000e+00> : vector<8x128xf32>
    %158 = vector.multi_reduction <add>, %157, %cst_96 [0] : vector<1x8x128xf32> to vector<8x128xf32>
    %159 = arith.addf %156, %158 : vector<8x128xf32>
    %c5_97 = arith.constant 5 : index
    %c0_98 = arith.constant 0 : index
    %c0_99 = arith.constant 0 : index
    %160 = vector.load %arg5[%c5_97, %c0_98, %c0_99] : memref<10x8x128xf32, #tpu.memory_space<vmem>>, vector<1x8x128xf32>
    %161 = vector.shape_cast %160 : vector<1x8x128xf32> to vector<8x128xf32>
    %162 = vector.shape_cast %159 : vector<8x128xf32> to vector<1x8x128xf32>
    tpu.vector_store %arg5[%c5_97, %c0_98, %c0_99], %162 {strides = array<i32>} : memref<10x8x128xf32, #tpu.memory_space<vmem>>, vector<1x8x128xf32>,
    %c5_100 = arith.constant 5 : index
    %c0_101 = arith.constant 0 : index
    %c0_102 = arith.constant 0 : index
    %163 = vector.load %arg6[%c5_100, %c0_101, %c0_102] : memref<10x8x128xf32, #tpu.memory_space<vmem>>, vector<1x8x128xf32>
    %164 = vector.shape_cast %163 : vector<1x8x128xf32> to vector<8x128xf32>
    %165 = arith.mulf %13, %154 : vector<8x128xf32>
    %166 = vector.shape_cast %165 : vector<8x128xf32> to vector<1x8x128xf32>
    %cst_103 = arith.constant dense<0.000000e+00> : vector<8x128xf32>
    %167 = vector.multi_reduction <add>, %166, %cst_103 [0] : vector<1x8x128xf32> to vector<8x128xf32>
    %168 = arith.addf %164, %167 : vector<8x128xf32>
    %c5_104 = arith.constant 5 : index
    %c0_105 = arith.constant 0 : index
    %c0_106 = arith.constant 0 : index
    %169 = vector.load %arg6[%c5_104, %c0_105, %c0_106] : memref<10x8x128xf32, #tpu.memory_space<vmem>>, vector<1x8x128xf32>
    %170 = vector.shape_cast %169 : vector<1x8x128xf32> to vector<8x128xf32>
    %171 = vector.shape_cast %168 : vector<8x128xf32> to vector<1x8x128xf32>
    tpu.vector_store %arg6[%c5_104, %c0_105, %c0_106], %171 {strides = array<i32>} : memref<10x8x128xf32, #tpu.memory_space<vmem>>, vector<1x8x128xf32>,
    %172 = arith.andi %17, %34 : vector<8x128xi1>
    %cst_107 = arith.constant dense<true> : vector<8x128xi1>
    %173 = arith.xori %36, %cst_107 : vector<8x128xi1>
    %174 = arith.andi %172, %173 : vector<8x128xi1>
    %175 = arith.extui %174 : vector<8x128xi1> to vector<8x128xi32>
    %176 = arith.sitofp %175 : vector<8x128xi32> to vector<8x128xf32>
    %c6 = arith.constant 6 : index
    %c0_108 = arith.constant 0 : index
    %c0_109 = arith.constant 0 : index
    %177 = vector.load %arg5[%c6, %c0_108, %c0_109] : memref<10x8x128xf32, #tpu.memory_space<vmem>>, vector<1x8x128xf32>
    %178 = vector.shape_cast %177 : vector<1x8x128xf32> to vector<8x128xf32>
    %179 = vector.shape_cast %176 : vector<8x128xf32> to vector<1x8x128xf32>
    %cst_110 = arith.constant dense<0.000000e+00> : vector<8x128xf32>
    %180 = vector.multi_reduction <add>, %179, %cst_110 [0] : vector<1x8x128xf32> to vector<8x128xf32>
    %181 = arith.addf %178, %180 : vector<8x128xf32>
    %c6_111 = arith.constant 6 : index
    %c0_112 = arith.constant 0 : index
    %c0_113 = arith.constant 0 : index
    %182 = vector.load %arg5[%c6_111, %c0_112, %c0_113] : memref<10x8x128xf32, #tpu.memory_space<vmem>>, vector<1x8x128xf32>
    %183 = vector.shape_cast %182 : vector<1x8x128xf32> to vector<8x128xf32>
    %184 = vector.shape_cast %181 : vector<8x128xf32> to vector<1x8x128xf32>
    tpu.vector_store %arg5[%c6_111, %c0_112, %c0_113], %184 {strides = array<i32>} : memref<10x8x128xf32, #tpu.memory_space<vmem>>, vector<1x8x128xf32>,
    %c6_114 = arith.constant 6 : index
    %c0_115 = arith.constant 0 : index
    %c0_116 = arith.constant 0 : index
    %185 = vector.load %arg6[%c6_114, %c0_115, %c0_116] : memref<10x8x128xf32, #tpu.memory_space<vmem>>, vector<1x8x128xf32>
    %186 = vector.shape_cast %185 : vector<1x8x128xf32> to vector<8x128xf32>
    %187 = arith.mulf %13, %176 : vector<8x128xf32>
    %188 = vector.shape_cast %187 : vector<8x128xf32> to vector<1x8x128xf32>
    %cst_117 = arith.constant dense<0.000000e+00> : vector<8x128xf32>
    %189 = vector.multi_reduction <add>, %188, %cst_117 [0] : vector<1x8x128xf32> to vector<8x128xf32>
    %190 = arith.addf %186, %189 : vector<8x128xf32>
    %c6_118 = arith.constant 6 : index
    %c0_119 = arith.constant 0 : index
    %c0_120 = arith.constant 0 : index
    %191 = vector.load %arg6[%c6_118, %c0_119, %c0_120] : memref<10x8x128xf32, #tpu.memory_space<vmem>>, vector<1x8x128xf32>
    %192 = vector.shape_cast %191 : vector<1x8x128xf32> to vector<8x128xf32>
    %193 = vector.shape_cast %190 : vector<8x128xf32> to vector<1x8x128xf32>
    tpu.vector_store %arg6[%c6_118, %c0_119, %c0_120], %193 {strides = array<i32>} : memref<10x8x128xf32, #tpu.memory_space<vmem>>, vector<1x8x128xf32>,
    %194 = arith.andi %17, %36 : vector<8x128xi1>
    %cst_121 = arith.constant dense<true> : vector<8x128xi1>
    %195 = arith.xori %38, %cst_121 : vector<8x128xi1>
    %196 = arith.andi %194, %195 : vector<8x128xi1>
    %197 = arith.extui %196 : vector<8x128xi1> to vector<8x128xi32>
    %198 = arith.sitofp %197 : vector<8x128xi32> to vector<8x128xf32>
    %c7 = arith.constant 7 : index
    %c0_122 = arith.constant 0 : index
    %c0_123 = arith.constant 0 : index
    %199 = vector.load %arg5[%c7, %c0_122, %c0_123] : memref<10x8x128xf32, #tpu.memory_space<vmem>>, vector<1x8x128xf32>
    %200 = vector.shape_cast %199 : vector<1x8x128xf32> to vector<8x128xf32>
    %201 = vector.shape_cast %198 : vector<8x128xf32> to vector<1x8x128xf32>
    %cst_124 = arith.constant dense<0.000000e+00> : vector<8x128xf32>
    %202 = vector.multi_reduction <add>, %201, %cst_124 [0] : vector<1x8x128xf32> to vector<8x128xf32>
    %203 = arith.addf %200, %202 : vector<8x128xf32>
    %c7_125 = arith.constant 7 : index
    %c0_126 = arith.constant 0 : index
    %c0_127 = arith.constant 0 : index
    %204 = vector.load %arg5[%c7_125, %c0_126, %c0_127] : memref<10x8x128xf32, #tpu.memory_space<vmem>>, vector<1x8x128xf32>
    %205 = vector.shape_cast %204 : vector<1x8x128xf32> to vector<8x128xf32>
    %206 = vector.shape_cast %203 : vector<8x128xf32> to vector<1x8x128xf32>
    tpu.vector_store %arg5[%c7_125, %c0_126, %c0_127], %206 {strides = array<i32>} : memref<10x8x128xf32, #tpu.memory_space<vmem>>, vector<1x8x128xf32>,
    %c7_128 = arith.constant 7 : index
    %c0_129 = arith.constant 0 : index
    %c0_130 = arith.constant 0 : index
    %207 = vector.load %arg6[%c7_128, %c0_129, %c0_130] : memref<10x8x128xf32, #tpu.memory_space<vmem>>, vector<1x8x128xf32>
    %208 = vector.shape_cast %207 : vector<1x8x128xf32> to vector<8x128xf32>
    %209 = arith.mulf %13, %198 : vector<8x128xf32>
    %210 = vector.shape_cast %209 : vector<8x128xf32> to vector<1x8x128xf32>
    %cst_131 = arith.constant dense<0.000000e+00> : vector<8x128xf32>
    %211 = vector.multi_reduction <add>, %210, %cst_131 [0] : vector<1x8x128xf32> to vector<8x128xf32>
    %212 = arith.addf %208, %211 : vector<8x128xf32>
    %c7_132 = arith.constant 7 : index
    %c0_133 = arith.constant 0 : index
    %c0_134 = arith.constant 0 : index
    %213 = vector.load %arg6[%c7_132, %c0_133, %c0_134] : memref<10x8x128xf32, #tpu.memory_space<vmem>>, vector<1x8x128xf32>
    %214 = vector.shape_cast %213 : vector<1x8x128xf32> to vector<8x128xf32>
    %215 = vector.shape_cast %212 : vector<8x128xf32> to vector<1x8x128xf32>
    tpu.vector_store %arg6[%c7_132, %c0_133, %c0_134], %215 {strides = array<i32>} : memref<10x8x128xf32, #tpu.memory_space<vmem>>, vector<1x8x128xf32>,
    %216 = arith.andi %17, %38 : vector<8x128xi1>
    %cst_135 = arith.constant dense<true> : vector<8x128xi1>
    %217 = arith.xori %40, %cst_135 : vector<8x128xi1>
    %218 = arith.andi %216, %217 : vector<8x128xi1>
    %219 = arith.extui %218 : vector<8x128xi1> to vector<8x128xi32>
    %220 = arith.sitofp %219 : vector<8x128xi32> to vector<8x128xf32>
    %c8 = arith.constant 8 : index
    %c0_136 = arith.constant 0 : index
    %c0_137 = arith.constant 0 : index
    %221 = vector.load %arg5[%c8, %c0_136, %c0_137] : memref<10x8x128xf32, #tpu.memory_space<vmem>>, vector<1x8x128xf32>
    %222 = vector.shape_cast %221 : vector<1x8x128xf32> to vector<8x128xf32>
    %223 = vector.shape_cast %220 : vector<8x128xf32> to vector<1x8x128xf32>
    %cst_138 = arith.constant dense<0.000000e+00> : vector<8x128xf32>
    %224 = vector.multi_reduction <add>, %223, %cst_138 [0] : vector<1x8x128xf32> to vector<8x128xf32>
    %225 = arith.addf %222, %224 : vector<8x128xf32>
    %c8_139 = arith.constant 8 : index
    %c0_140 = arith.constant 0 : index
    %c0_141 = arith.constant 0 : index
    %226 = vector.load %arg5[%c8_139, %c0_140, %c0_141] : memref<10x8x128xf32, #tpu.memory_space<vmem>>, vector<1x8x128xf32>
    %227 = vector.shape_cast %226 : vector<1x8x128xf32> to vector<8x128xf32>
    %228 = vector.shape_cast %225 : vector<8x128xf32> to vector<1x8x128xf32>
    tpu.vector_store %arg5[%c8_139, %c0_140, %c0_141], %228 {strides = array<i32>} : memref<10x8x128xf32, #tpu.memory_space<vmem>>, vector<1x8x128xf32>,
    %c8_142 = arith.constant 8 : index
    %c0_143 = arith.constant 0 : index
    %c0_144 = arith.constant 0 : index
    %229 = vector.load %arg6[%c8_142, %c0_143, %c0_144] : memref<10x8x128xf32, #tpu.memory_space<vmem>>, vector<1x8x128xf32>
    %230 = vector.shape_cast %229 : vector<1x8x128xf32> to vector<8x128xf32>
    %231 = arith.mulf %13, %220 : vector<8x128xf32>
    %232 = vector.shape_cast %231 : vector<8x128xf32> to vector<1x8x128xf32>
    %cst_145 = arith.constant dense<0.000000e+00> : vector<8x128xf32>
    %233 = vector.multi_reduction <add>, %232, %cst_145 [0] : vector<1x8x128xf32> to vector<8x128xf32>
    %234 = arith.addf %230, %233 : vector<8x128xf32>
    %c8_146 = arith.constant 8 : index
    %c0_147 = arith.constant 0 : index
    %c0_148 = arith.constant 0 : index
    %235 = vector.load %arg6[%c8_146, %c0_147, %c0_148] : memref<10x8x128xf32, #tpu.memory_space<vmem>>, vector<1x8x128xf32>
    %236 = vector.shape_cast %235 : vector<1x8x128xf32> to vector<8x128xf32>
    %237 = vector.shape_cast %234 : vector<8x128xf32> to vector<1x8x128xf32>
    tpu.vector_store %arg6[%c8_146, %c0_147, %c0_148], %237 {strides = array<i32>} : memref<10x8x128xf32, #tpu.memory_space<vmem>>, vector<1x8x128xf32>,
    %238 = arith.andi %17, %40 : vector<8x128xi1>
    %239 = arith.extui %238 : vector<8x128xi1> to vector<8x128xi32>
    %240 = arith.sitofp %239 : vector<8x128xi32> to vector<8x128xf32>
    %c9 = arith.constant 9 : index
    %c0_149 = arith.constant 0 : index
    %c0_150 = arith.constant 0 : index
    %241 = vector.load %arg5[%c9, %c0_149, %c0_150] : memref<10x8x128xf32, #tpu.memory_space<vmem>>, vector<1x8x128xf32>
    %242 = vector.shape_cast %241 : vector<1x8x128xf32> to vector<8x128xf32>
    %243 = vector.shape_cast %240 : vector<8x128xf32> to vector<1x8x128xf32>
    %cst_151 = arith.constant dense<0.000000e+00> : vector<8x128xf32>
    %244 = vector.multi_reduction <add>, %243, %cst_151 [0] : vector<1x8x128xf32> to vector<8x128xf32>
    %245 = arith.addf %242, %244 : vector<8x128xf32>
    %c9_152 = arith.constant 9 : index
    %c0_153 = arith.constant 0 : index
    %c0_154 = arith.constant 0 : index
    %246 = vector.load %arg5[%c9_152, %c0_153, %c0_154] : memref<10x8x128xf32, #tpu.memory_space<vmem>>, vector<1x8x128xf32>
    %247 = vector.shape_cast %246 : vector<1x8x128xf32> to vector<8x128xf32>
    %248 = vector.shape_cast %245 : vector<8x128xf32> to vector<1x8x128xf32>
    tpu.vector_store %arg5[%c9_152, %c0_153, %c0_154], %248 {strides = array<i32>} : memref<10x8x128xf32, #tpu.memory_space<vmem>>, vector<1x8x128xf32>,
    %c9_155 = arith.constant 9 : index
    %c0_156 = arith.constant 0 : index
    %c0_157 = arith.constant 0 : index
    %249 = vector.load %arg6[%c9_155, %c0_156, %c0_157] : memref<10x8x128xf32, #tpu.memory_space<vmem>>, vector<1x8x128xf32>
    %250 = vector.shape_cast %249 : vector<1x8x128xf32> to vector<8x128xf32>
    %251 = arith.mulf %13, %240 : vector<8x128xf32>
    %252 = vector.shape_cast %251 : vector<8x128xf32> to vector<1x8x128xf32>
    %cst_158 = arith.constant dense<0.000000e+00> : vector<8x128xf32>
    %253 = vector.multi_reduction <add>, %252, %cst_158 [0] : vector<1x8x128xf32> to vector<8x128xf32>
    %254 = arith.addf %250, %253 : vector<8x128xf32>
    %c9_159 = arith.constant 9 : index
    %c0_160 = arith.constant 0 : index
    %c0_161 = arith.constant 0 : index
    %255 = vector.load %arg6[%c9_159, %c0_160, %c0_161] : memref<10x8x128xf32, #tpu.memory_space<vmem>>, vector<1x8x128xf32>
    %256 = vector.shape_cast %255 : vector<1x8x128xf32> to vector<8x128xf32>
    %257 = vector.shape_cast %254 : vector<8x128xf32> to vector<1x8x128xf32>
    tpu.vector_store %arg6[%c9_159, %c0_160, %c0_161], %257 {strides = array<i32>} : memref<10x8x128xf32, #tpu.memory_space<vmem>>, vector<1x8x128xf32>,
    %c0_i32_162 = arith.constant 0 : i32
    %258 = arith.cmpi eq, %arg0, %c0_i32_162 : i32
    %259 = arith.extui %258 : i1 to i32
    %c0_i32_163 = arith.constant 0 : i32
    %260 = arith.cmpi ne, %259, %c0_i32_163 : i32
    scf.if %260 {
      %c0_164 = arith.constant 0 : index
      %c0_165 = arith.constant 0 : index
      %261 = vector.load %arg7[%c0_164, %c0_165] : memref<8x128xf32, #tpu.memory_space<vmem>>, vector<8x128xf32>
      %262 = vector.shape_cast %261 : vector<8x128xf32> to vector<1x8x128xf32>
      %cst_166 = arith.constant dense<0.000000e+00> : vector<1xf32>
      %263 = vector.multi_reduction <add>, %262, %cst_166 [1, 2] : vector<1x8x128xf32> to vector<1xf32>
      %264 = vector.shape_cast %263 : vector<1xf32> to vector<1x1x1xf32>
      %265 = vector.extract %264[0, 0, 0] : f32 from vector<1x1x1xf32>
      %cst_167 = arith.constant 1.000000e+00 : f32
      %266 = arith.maximumf %265, %cst_167 : f32
      %c0_168 = arith.constant 0 : index
      %c0_169 = arith.constant 0 : index
      %c0_170 = arith.constant 0 : index
      %267 = vector.load %arg5[%c0_168, %c0_169, %c0_170] : memref<10x8x128xf32, #tpu.memory_space<vmem>>, vector<1x8x128xf32>
      %268 = vector.shape_cast %267 : vector<1x8x128xf32> to vector<8x128xf32>
      %269 = vector.shape_cast %268 : vector<8x128xf32> to vector<1x8x128xf32>
      %cst_171 = arith.constant dense<0.000000e+00> : vector<1xf32>
      %270 = vector.multi_reduction <add>, %269, %cst_171 [1, 2] : vector<1x8x128xf32> to vector<1xf32>
      %271 = vector.shape_cast %270 : vector<1xf32> to vector<1x1x1xf32>
      %272 = vector.extract %271[0, 0, 0] : f32 from vector<1x1x1xf32>
      %c0_172 = arith.constant 0 : index
      %c0_173 = arith.constant 0 : index
      %c0_174 = arith.constant 0 : index
      %273 = vector.load %arg6[%c0_172, %c0_173, %c0_174] : memref<10x8x128xf32, #tpu.memory_space<vmem>>, vector<1x8x128xf32>
      %274 = vector.shape_cast %273 : vector<1x8x128xf32> to vector<8x128xf32>
      %275 = vector.shape_cast %274 : vector<8x128xf32> to vector<1x8x128xf32>
      %cst_175 = arith.constant dense<0.000000e+00> : vector<1xf32>
      %276 = vector.multi_reduction <add>, %275, %cst_175 [1, 2] : vector<1x8x128xf32> to vector<1xf32>
      %277 = vector.shape_cast %276 : vector<1xf32> to vector<1x1x1xf32>
      %278 = vector.extract %277[0, 0, 0] : f32 from vector<1x1x1xf32>
      %cst_176 = arith.constant 0.000000e+00 : f32
      %279 = arith.cmpf ogt, %272, %cst_176 : f32
      %cst_177 = arith.constant 1.000000e+00 : f32
      %cst_178 = arith.constant 0.000000e+00 : f32
      %280 = arith.select %279, %cst_177, %cst_178 : f32
      %cst_179 = arith.constant 0.000000e+00 : f32
      %281 = arith.addf %cst_179, %280 : f32
      %cst_180 = arith.constant 1.000000e+00 : f32
      %282 = arith.maximumf %272, %cst_180 : f32
      %283 = arith.divf %266, %282 : f32
      %284 = arith.mulf %283, %278 : f32
      %cst_181 = arith.constant 0.000000e+00 : f32
      %285 = arith.select %279, %284, %cst_181 : f32
      %cst_182 = arith.constant 0.000000e+00 : f32
      %286 = arith.addf %cst_182, %285 : f32
      %c1_183 = arith.constant 1 : index
      %c0_184 = arith.constant 0 : index
      %c0_185 = arith.constant 0 : index
      %287 = vector.load %arg5[%c1_183, %c0_184, %c0_185] : memref<10x8x128xf32, #tpu.memory_space<vmem>>, vector<1x8x128xf32>
      %288 = vector.shape_cast %287 : vector<1x8x128xf32> to vector<8x128xf32>
      %289 = vector.shape_cast %288 : vector<8x128xf32> to vector<1x8x128xf32>
      %cst_186 = arith.constant dense<0.000000e+00> : vector<1xf32>
      %290 = vector.multi_reduction <add>, %289, %cst_186 [1, 2] : vector<1x8x128xf32> to vector<1xf32>
      %291 = vector.shape_cast %290 : vector<1xf32> to vector<1x1x1xf32>
      %292 = vector.extract %291[0, 0, 0] : f32 from vector<1x1x1xf32>
      %c1_187 = arith.constant 1 : index
      %c0_188 = arith.constant 0 : index
      %c0_189 = arith.constant 0 : index
      %293 = vector.load %arg6[%c1_187, %c0_188, %c0_189] : memref<10x8x128xf32, #tpu.memory_space<vmem>>, vector<1x8x128xf32>
      %294 = vector.shape_cast %293 : vector<1x8x128xf32> to vector<8x128xf32>
      %295 = vector.shape_cast %294 : vector<8x128xf32> to vector<1x8x128xf32>
      %cst_190 = arith.constant dense<0.000000e+00> : vector<1xf32>
      %296 = vector.multi_reduction <add>, %295, %cst_190 [1, 2] : vector<1x8x128xf32> to vector<1xf32>
      %297 = vector.shape_cast %296 : vector<1xf32> to vector<1x1x1xf32>
      %298 = vector.extract %297[0, 0, 0] : f32 from vector<1x1x1xf32>
      %cst_191 = arith.constant 0.000000e+00 : f32
      %299 = arith.cmpf ogt, %292, %cst_191 : f32
      %cst_192 = arith.constant 1.000000e+00 : f32
      %cst_193 = arith.constant 0.000000e+00 : f32
      %300 = arith.select %299, %cst_192, %cst_193 : f32
      %301 = arith.addf %281, %300 : f32
      %cst_194 = arith.constant 1.000000e+00 : f32
      %302 = arith.maximumf %292, %cst_194 : f32
      %303 = arith.divf %266, %302 : f32
      %304 = arith.mulf %303, %298 : f32
      %cst_195 = arith.constant 0.000000e+00 : f32
      %305 = arith.select %299, %304, %cst_195 : f32
      %306 = arith.addf %286, %305 : f32
      %c2_196 = arith.constant 2 : index
      %c0_197 = arith.constant 0 : index
      %c0_198 = arith.constant 0 : index
      %307 = vector.load %arg5[%c2_196, %c0_197, %c0_198] : memref<10x8x128xf32, #tpu.memory_space<vmem>>, vector<1x8x128xf32>
      %308 = vector.shape_cast %307 : vector<1x8x128xf32> to vector<8x128xf32>
      %309 = vector.shape_cast %308 : vector<8x128xf32> to vector<1x8x128xf32>
      %cst_199 = arith.constant dense<0.000000e+00> : vector<1xf32>
      %310 = vector.multi_reduction <add>, %309, %cst_199 [1, 2] : vector<1x8x128xf32> to vector<1xf32>
      %311 = vector.shape_cast %310 : vector<1xf32> to vector<1x1x1xf32>
      %312 = vector.extract %311[0, 0, 0] : f32 from vector<1x1x1xf32>
      %c2_200 = arith.constant 2 : index
      %c0_201 = arith.constant 0 : index
      %c0_202 = arith.constant 0 : index
      %313 = vector.load %arg6[%c2_200, %c0_201, %c0_202] : memref<10x8x128xf32, #tpu.memory_space<vmem>>, vector<1x8x128xf32>
      %314 = vector.shape_cast %313 : vector<1x8x128xf32> to vector<8x128xf32>
      %315 = vector.shape_cast %314 : vector<8x128xf32> to vector<1x8x128xf32>
      %cst_203 = arith.constant dense<0.000000e+00> : vector<1xf32>
      %316 = vector.multi_reduction <add>, %315, %cst_203 [1, 2] : vector<1x8x128xf32> to vector<1xf32>
      %317 = vector.shape_cast %316 : vector<1xf32> to vector<1x1x1xf32>
      %318 = vector.extract %317[0, 0, 0] : f32 from vector<1x1x1xf32>
      %cst_204 = arith.constant 0.000000e+00 : f32
      %319 = arith.cmpf ogt, %312, %cst_204 : f32
      %cst_205 = arith.constant 1.000000e+00 : f32
      %cst_206 = arith.constant 0.000000e+00 : f32
      %320 = arith.select %319, %cst_205, %cst_206 : f32
      %321 = arith.addf %301, %320 : f32
      %cst_207 = arith.constant 1.000000e+00 : f32
      %322 = arith.maximumf %312, %cst_207 : f32
      %323 = arith.divf %266, %322 : f32
      %324 = arith.mulf %323, %318 : f32
      %cst_208 = arith.constant 0.000000e+00 : f32
      %325 = arith.select %319, %324, %cst_208 : f32
      %326 = arith.addf %306, %325 : f32
      %c3_209 = arith.constant 3 : index
      %c0_210 = arith.constant 0 : index
      %c0_211 = arith.constant 0 : index
      %327 = vector.load %arg5[%c3_209, %c0_210, %c0_211] : memref<10x8x128xf32, #tpu.memory_space<vmem>>, vector<1x8x128xf32>
      %328 = vector.shape_cast %327 : vector<1x8x128xf32> to vector<8x128xf32>
      %329 = vector.shape_cast %328 : vector<8x128xf32> to vector<1x8x128xf32>
      %cst_212 = arith.constant dense<0.000000e+00> : vector<1xf32>
      %330 = vector.multi_reduction <add>, %329, %cst_212 [1, 2] : vector<1x8x128xf32> to vector<1xf32>
      %331 = vector.shape_cast %330 : vector<1xf32> to vector<1x1x1xf32>
      %332 = vector.extract %331[0, 0, 0] : f32 from vector<1x1x1xf32>
      %c3_213 = arith.constant 3 : index
      %c0_214 = arith.constant 0 : index
      %c0_215 = arith.constant 0 : index
      %333 = vector.load %arg6[%c3_213, %c0_214, %c0_215] : memref<10x8x128xf32, #tpu.memory_space<vmem>>, vector<1x8x128xf32>
      %334 = vector.shape_cast %333 : vector<1x8x128xf32> to vector<8x128xf32>
      %335 = vector.shape_cast %334 : vector<8x128xf32> to vector<1x8x128xf32>
      %cst_216 = arith.constant dense<0.000000e+00> : vector<1xf32>
      %336 = vector.multi_reduction <add>, %335, %cst_216 [1, 2] : vector<1x8x128xf32> to vector<1xf32>
      %337 = vector.shape_cast %336 : vector<1xf32> to vector<1x1x1xf32>
      %338 = vector.extract %337[0, 0, 0] : f32 from vector<1x1x1xf32>
      %cst_217 = arith.constant 0.000000e+00 : f32
      %339 = arith.cmpf ogt, %332, %cst_217 : f32
      %cst_218 = arith.constant 1.000000e+00 : f32
      %cst_219 = arith.constant 0.000000e+00 : f32
      %340 = arith.select %339, %cst_218, %cst_219 : f32
      %341 = arith.addf %321, %340 : f32
      %cst_220 = arith.constant 1.000000e+00 : f32
      %342 = arith.maximumf %332, %cst_220 : f32
      %343 = arith.divf %266, %342 : f32
      %344 = arith.mulf %343, %338 : f32
      %cst_221 = arith.constant 0.000000e+00 : f32
      %345 = arith.select %339, %344, %cst_221 : f32
      %346 = arith.addf %326, %345 : f32
      %c4_222 = arith.constant 4 : index
      %c0_223 = arith.constant 0 : index
      %c0_224 = arith.constant 0 : index
      %347 = vector.load %arg5[%c4_222, %c0_223, %c0_224] : memref<10x8x128xf32, #tpu.memory_space<vmem>>, vector<1x8x128xf32>
      %348 = vector.shape_cast %347 : vector<1x8x128xf32> to vector<8x128xf32>
      %349 = vector.shape_cast %348 : vector<8x128xf32> to vector<1x8x128xf32>
      %cst_225 = arith.constant dense<0.000000e+00> : vector<1xf32>
      %350 = vector.multi_reduction <add>, %349, %cst_225 [1, 2] : vector<1x8x128xf32> to vector<1xf32>
      %351 = vector.shape_cast %350 : vector<1xf32> to vector<1x1x1xf32>
      %352 = vector.extract %351[0, 0, 0] : f32 from vector<1x1x1xf32>
      %c4_226 = arith.constant 4 : index
      %c0_227 = arith.constant 0 : index
      %c0_228 = arith.constant 0 : index
      %353 = vector.load %arg6[%c4_226, %c0_227, %c0_228] : memref<10x8x128xf32, #tpu.memory_space<vmem>>, vector<1x8x128xf32>
      %354 = vector.shape_cast %353 : vector<1x8x128xf32> to vector<8x128xf32>
      %355 = vector.shape_cast %354 : vector<8x128xf32> to vector<1x8x128xf32>
      %cst_229 = arith.constant dense<0.000000e+00> : vector<1xf32>
      %356 = vector.multi_reduction <add>, %355, %cst_229 [1, 2] : vector<1x8x128xf32> to vector<1xf32>
      %357 = vector.shape_cast %356 : vector<1xf32> to vector<1x1x1xf32>
      %358 = vector.extract %357[0, 0, 0] : f32 from vector<1x1x1xf32>
      %cst_230 = arith.constant 0.000000e+00 : f32
      %359 = arith.cmpf ogt, %352, %cst_230 : f32
      %cst_231 = arith.constant 1.000000e+00 : f32
      %cst_232 = arith.constant 0.000000e+00 : f32
      %360 = arith.select %359, %cst_231, %cst_232 : f32
      %361 = arith.addf %341, %360 : f32
      %cst_233 = arith.constant 1.000000e+00 : f32
      %362 = arith.maximumf %352, %cst_233 : f32
      %363 = arith.divf %266, %362 : f32
      %364 = arith.mulf %363, %358 : f32
      %cst_234 = arith.constant 0.000000e+00 : f32
      %365 = arith.select %359, %364, %cst_234 : f32
      %366 = arith.addf %346, %365 : f32
      %c5_235 = arith.constant 5 : index
      %c0_236 = arith.constant 0 : index
      %c0_237 = arith.constant 0 : index
      %367 = vector.load %arg5[%c5_235, %c0_236, %c0_237] : memref<10x8x128xf32, #tpu.memory_space<vmem>>, vector<1x8x128xf32>
      %368 = vector.shape_cast %367 : vector<1x8x128xf32> to vector<8x128xf32>
      %369 = vector.shape_cast %368 : vector<8x128xf32> to vector<1x8x128xf32>
      %cst_238 = arith.constant dense<0.000000e+00> : vector<1xf32>
      %370 = vector.multi_reduction <add>, %369, %cst_238 [1, 2] : vector<1x8x128xf32> to vector<1xf32>
      %371 = vector.shape_cast %370 : vector<1xf32> to vector<1x1x1xf32>
      %372 = vector.extract %371[0, 0, 0] : f32 from vector<1x1x1xf32>
      %c5_239 = arith.constant 5 : index
      %c0_240 = arith.constant 0 : index
      %c0_241 = arith.constant 0 : index
      %373 = vector.load %arg6[%c5_239, %c0_240, %c0_241] : memref<10x8x128xf32, #tpu.memory_space<vmem>>, vector<1x8x128xf32>
      %374 = vector.shape_cast %373 : vector<1x8x128xf32> to vector<8x128xf32>
      %375 = vector.shape_cast %374 : vector<8x128xf32> to vector<1x8x128xf32>
      %cst_242 = arith.constant dense<0.000000e+00> : vector<1xf32>
      %376 = vector.multi_reduction <add>, %375, %cst_242 [1, 2] : vector<1x8x128xf32> to vector<1xf32>
      %377 = vector.shape_cast %376 : vector<1xf32> to vector<1x1x1xf32>
      %378 = vector.extract %377[0, 0, 0] : f32 from vector<1x1x1xf32>
      %cst_243 = arith.constant 0.000000e+00 : f32
      %379 = arith.cmpf ogt, %372, %cst_243 : f32
      %cst_244 = arith.constant 1.000000e+00 : f32
      %cst_245 = arith.constant 0.000000e+00 : f32
      %380 = arith.select %379, %cst_244, %cst_245 : f32
      %381 = arith.addf %361, %380 : f32
      %cst_246 = arith.constant 1.000000e+00 : f32
      %382 = arith.maximumf %372, %cst_246 : f32
      %383 = arith.divf %266, %382 : f32
      %384 = arith.mulf %383, %378 : f32
      %cst_247 = arith.constant 0.000000e+00 : f32
      %385 = arith.select %379, %384, %cst_247 : f32
      %386 = arith.addf %366, %385 : f32
      %c6_248 = arith.constant 6 : index
      %c0_249 = arith.constant 0 : index
      %c0_250 = arith.constant 0 : index
      %387 = vector.load %arg5[%c6_248, %c0_249, %c0_250] : memref<10x8x128xf32, #tpu.memory_space<vmem>>, vector<1x8x128xf32>
      %388 = vector.shape_cast %387 : vector<1x8x128xf32> to vector<8x128xf32>
      %389 = vector.shape_cast %388 : vector<8x128xf32> to vector<1x8x128xf32>
      %cst_251 = arith.constant dense<0.000000e+00> : vector<1xf32>
      %390 = vector.multi_reduction <add>, %389, %cst_251 [1, 2] : vector<1x8x128xf32> to vector<1xf32>
      %391 = vector.shape_cast %390 : vector<1xf32> to vector<1x1x1xf32>
      %392 = vector.extract %391[0, 0, 0] : f32 from vector<1x1x1xf32>
      %c6_252 = arith.constant 6 : index
      %c0_253 = arith.constant 0 : index
      %c0_254 = arith.constant 0 : index
      %393 = vector.load %arg6[%c6_252, %c0_253, %c0_254] : memref<10x8x128xf32, #tpu.memory_space<vmem>>, vector<1x8x128xf32>
      %394 = vector.shape_cast %393 : vector<1x8x128xf32> to vector<8x128xf32>
      %395 = vector.shape_cast %394 : vector<8x128xf32> to vector<1x8x128xf32>
      %cst_255 = arith.constant dense<0.000000e+00> : vector<1xf32>
      %396 = vector.multi_reduction <add>, %395, %cst_255 [1, 2] : vector<1x8x128xf32> to vector<1xf32>
      %397 = vector.shape_cast %396 : vector<1xf32> to vector<1x1x1xf32>
      %398 = vector.extract %397[0, 0, 0] : f32 from vector<1x1x1xf32>
      %cst_256 = arith.constant 0.000000e+00 : f32
      %399 = arith.cmpf ogt, %392, %cst_256 : f32
      %cst_257 = arith.constant 1.000000e+00 : f32
      %cst_258 = arith.constant 0.000000e+00 : f32
      %400 = arith.select %399, %cst_257, %cst_258 : f32
      %401 = arith.addf %381, %400 : f32
      %cst_259 = arith.constant 1.000000e+00 : f32
      %402 = arith.maximumf %392, %cst_259 : f32
      %403 = arith.divf %266, %402 : f32
      %404 = arith.mulf %403, %398 : f32
      %cst_260 = arith.constant 0.000000e+00 : f32
      %405 = arith.select %399, %404, %cst_260 : f32
      %406 = arith.addf %386, %405 : f32
      %c7_261 = arith.constant 7 : index
      %c0_262 = arith.constant 0 : index
      %c0_263 = arith.constant 0 : index
      %407 = vector.load %arg5[%c7_261, %c0_262, %c0_263] : memref<10x8x128xf32, #tpu.memory_space<vmem>>, vector<1x8x128xf32>
      %408 = vector.shape_cast %407 : vector<1x8x128xf32> to vector<8x128xf32>
      %409 = vector.shape_cast %408 : vector<8x128xf32> to vector<1x8x128xf32>
      %cst_264 = arith.constant dense<0.000000e+00> : vector<1xf32>
      %410 = vector.multi_reduction <add>, %409, %cst_264 [1, 2] : vector<1x8x128xf32> to vector<1xf32>
      %411 = vector.shape_cast %410 : vector<1xf32> to vector<1x1x1xf32>
      %412 = vector.extract %411[0, 0, 0] : f32 from vector<1x1x1xf32>
      %c7_265 = arith.constant 7 : index
      %c0_266 = arith.constant 0 : index
      %c0_267 = arith.constant 0 : index
      %413 = vector.load %arg6[%c7_265, %c0_266, %c0_267] : memref<10x8x128xf32, #tpu.memory_space<vmem>>, vector<1x8x128xf32>
      %414 = vector.shape_cast %413 : vector<1x8x128xf32> to vector<8x128xf32>
      %415 = vector.shape_cast %414 : vector<8x128xf32> to vector<1x8x128xf32>
      %cst_268 = arith.constant dense<0.000000e+00> : vector<1xf32>
      %416 = vector.multi_reduction <add>, %415, %cst_268 [1, 2] : vector<1x8x128xf32> to vector<1xf32>
      %417 = vector.shape_cast %416 : vector<1xf32> to vector<1x1x1xf32>
      %418 = vector.extract %417[0, 0, 0] : f32 from vector<1x1x1xf32>
      %cst_269 = arith.constant 0.000000e+00 : f32
      %419 = arith.cmpf ogt, %412, %cst_269 : f32
      %cst_270 = arith.constant 1.000000e+00 : f32
      %cst_271 = arith.constant 0.000000e+00 : f32
      %420 = arith.select %419, %cst_270, %cst_271 : f32
      %421 = arith.addf %401, %420 : f32
      %cst_272 = arith.constant 1.000000e+00 : f32
      %422 = arith.maximumf %412, %cst_272 : f32
      %423 = arith.divf %266, %422 : f32
      %424 = arith.mulf %423, %418 : f32
      %cst_273 = arith.constant 0.000000e+00 : f32
      %425 = arith.select %419, %424, %cst_273 : f32
      %426 = arith.addf %406, %425 : f32
      %c8_274 = arith.constant 8 : index
      %c0_275 = arith.constant 0 : index
      %c0_276 = arith.constant 0 : index
      %427 = vector.load %arg5[%c8_274, %c0_275, %c0_276] : memref<10x8x128xf32, #tpu.memory_space<vmem>>, vector<1x8x128xf32>
      %428 = vector.shape_cast %427 : vector<1x8x128xf32> to vector<8x128xf32>
      %429 = vector.shape_cast %428 : vector<8x128xf32> to vector<1x8x128xf32>
      %cst_277 = arith.constant dense<0.000000e+00> : vector<1xf32>
      %430 = vector.multi_reduction <add>, %429, %cst_277 [1, 2] : vector<1x8x128xf32> to vector<1xf32>
      %431 = vector.shape_cast %430 : vector<1xf32> to vector<1x1x1xf32>
      %432 = vector.extract %431[0, 0, 0] : f32 from vector<1x1x1xf32>
      %c8_278 = arith.constant 8 : index
      %c0_279 = arith.constant 0 : index
      %c0_280 = arith.constant 0 : index
      %433 = vector.load %arg6[%c8_278, %c0_279, %c0_280] : memref<10x8x128xf32, #tpu.memory_space<vmem>>, vector<1x8x128xf32>
      %434 = vector.shape_cast %433 : vector<1x8x128xf32> to vector<8x128xf32>
      %435 = vector.shape_cast %434 : vector<8x128xf32> to vector<1x8x128xf32>
      %cst_281 = arith.constant dense<0.000000e+00> : vector<1xf32>
      %436 = vector.multi_reduction <add>, %435, %cst_281 [1, 2] : vector<1x8x128xf32> to vector<1xf32>
      %437 = vector.shape_cast %436 : vector<1xf32> to vector<1x1x1xf32>
      %438 = vector.extract %437[0, 0, 0] : f32 from vector<1x1x1xf32>
      %cst_282 = arith.constant 0.000000e+00 : f32
      %439 = arith.cmpf ogt, %432, %cst_282 : f32
      %cst_283 = arith.constant 1.000000e+00 : f32
      %cst_284 = arith.constant 0.000000e+00 : f32
      %440 = arith.select %439, %cst_283, %cst_284 : f32
      %441 = arith.addf %421, %440 : f32
      %cst_285 = arith.constant 1.000000e+00 : f32
      %442 = arith.maximumf %432, %cst_285 : f32
      %443 = arith.divf %266, %442 : f32
      %444 = arith.mulf %443, %438 : f32
      %cst_286 = arith.constant 0.000000e+00 : f32
      %445 = arith.select %439, %444, %cst_286 : f32
      %446 = arith.addf %426, %445 : f32
      %c9_287 = arith.constant 9 : index
      %c0_288 = arith.constant 0 : index
      %c0_289 = arith.constant 0 : index
      %447 = vector.load %arg5[%c9_287, %c0_288, %c0_289] : memref<10x8x128xf32, #tpu.memory_space<vmem>>, vector<1x8x128xf32>
      %448 = vector.shape_cast %447 : vector<1x8x128xf32> to vector<8x128xf32>
      %449 = vector.shape_cast %448 : vector<8x128xf32> to vector<1x8x128xf32>
      %cst_290 = arith.constant dense<0.000000e+00> : vector<1xf32>
      %450 = vector.multi_reduction <add>, %449, %cst_290 [1, 2] : vector<1x8x128xf32> to vector<1xf32>
      %451 = vector.shape_cast %450 : vector<1xf32> to vector<1x1x1xf32>
      %452 = vector.extract %451[0, 0, 0] : f32 from vector<1x1x1xf32>
      %c9_291 = arith.constant 9 : index
      %c0_292 = arith.constant 0 : index
      %c0_293 = arith.constant 0 : index
      %453 = vector.load %arg6[%c9_291, %c0_292, %c0_293] : memref<10x8x128xf32, #tpu.memory_space<vmem>>, vector<1x8x128xf32>
      %454 = vector.shape_cast %453 : vector<1x8x128xf32> to vector<8x128xf32>
      %455 = vector.shape_cast %454 : vector<8x128xf32> to vector<1x8x128xf32>
      %cst_294 = arith.constant dense<0.000000e+00> : vector<1xf32>
      %456 = vector.multi_reduction <add>, %455, %cst_294 [1, 2] : vector<1x8x128xf32> to vector<1xf32>
      %457 = vector.shape_cast %456 : vector<1xf32> to vector<1x1x1xf32>
      %458 = vector.extract %457[0, 0, 0] : f32 from vector<1x1x1xf32>
      %cst_295 = arith.constant 0.000000e+00 : f32
      %459 = arith.cmpf ogt, %452, %cst_295 : f32
      %cst_296 = arith.constant 1.000000e+00 : f32
      %cst_297 = arith.constant 0.000000e+00 : f32
      %460 = arith.select %459, %cst_296, %cst_297 : f32
      %461 = arith.addf %441, %460 : f32
      %cst_298 = arith.constant 1.000000e+00 : f32
      %462 = arith.maximumf %452, %cst_298 : f32
      %463 = arith.divf %266, %462 : f32
      %464 = arith.mulf %463, %458 : f32
      %cst_299 = arith.constant 0.000000e+00 : f32
      %465 = arith.select %459, %464, %cst_299 : f32
      %466 = arith.addf %446, %465 : f32
      %cst_300 = arith.constant 1.000000e+00 : f32
      %467 = arith.maximumf %461, %cst_300 : f32
      %468 = arith.divf %466, %467 : f32
      %469 = arith.divf %468, %266 : f32
      %cst_301 = arith.constant 1.000000e+00 : f32
      %470 = arith.mulf %469, %cst_301 : f32
      %c0_302 = arith.constant 0 : index
      %c0_303 = arith.constant 0 : index
      %471 = memref.load %arg4[%c0_302, %c0_303] : memref<1x1xf32, #tpu.memory_space<smem>>
      memref.store %470, %arg4[%c0_302, %c0_303] : memref<1x1xf32, #tpu.memory_space<smem>>
    } else {
    }
    return
  }
  func.func @transform_0(%arg0: i32) -> (i32, i32) {
    %c0_i32 = arith.constant 0 : i32
    %c0_i32_0 = arith.constant 0 : i32
    return %arg0, %c0_i32 : i32, i32
  }
  func.func @transform_1(%arg0: i32) -> (i32, i32) {
    %c0_i32 = arith.constant 0 : i32
    %c0_i32_0 = arith.constant 0 : i32
    return %arg0, %c0_i32 : i32, i32
  }
  func.func @transform_2(%arg0: i32) -> (i32, i32) {
    %c0_i32 = arith.constant 0 : i32
    %c0_i32_0 = arith.constant 0 : i32
    return %arg0, %c0_i32 : i32, i32
  }
  func.func @transform_3(%arg0: i32) -> (i32, i32) {
    %c0_i32 = arith.constant 0 : i32
    %c0_i32_0 = arith.constant 0 : i32
    %c0_i32_1 = arith.constant 0 : i32
    return %c0_i32, %c0_i32_0 : i32, i32
  }
}

</mosaic_0001>

<llo_original>
// kernel: tpu_custom_call.1
$region0: #{tpu_custom_call.1}
  #allocation0 [shape = 'u32[]', space=smem, size = 0x4, offset = 0x4, fixed_abs, tag = 'smem constant byte address 0x4 - core index']
  #allocation1 [shape = 'u32[144,128]{1,0:T(1,128)}', space=vmem, size = 0x12000, scoped, tag = 'internal scratch']
  #allocation2 [shape = 'f32[10,8,128]{2,1,0:T(8,128)}', space=vmem, size = 0xa000, scoped, tag = 'scratch operand']
  #allocation3 [shape = 'f32[10,8,128]{2,1,0:T(8,128)}', space=vmem, size = 0xa000, scoped, tag = 'scratch operand']
  #allocation4 [shape = 'f32[8,128]{1,0:T(8,128)}', space=vmem, size = 0x1000, scoped, tag = 'scratch operand']
  %s0 = inlined_call_operand.hbm [shape: f32[8,128], index: 0, kind: input, shape index: {}]
  %s1 = inlined_call_operand.hbm [shape: f32[8,128], index: 1, kind: input, shape index: {}]
  %s2 = inlined_call_operand.hbm [shape: f32[8,128], index: 2, kind: input, shape index: {}]
  %s3 = inlined_call_operand.hbm [shape: f32[1,1], index: 3, kind: output, shape index: {}]
  %s4 = sld [smem:[#allocation0]]
  $region42: #{tpu_custom_call.1} parent=0
    _
  %s6 = ssub.s32 1, %s4
  %s7 = scalar_select 0, %s6, %s4
  $region1: #{tpu_custom_call.1} parent=0
    #allocation5 [shape = 'u8[4096]{0}', space=vmem, size = 0x1000, scoped, tag = 'input window, operand 0, single buffered']
    #allocation6 [shape = 's32[1]{0}', space=sflag, size = 0x4, scoped, tag = 'scoped memory for tpu_custom_call.1']
    #allocation7 [shape = 's32[1]{0}', space=sflag, size = 0x4, scoped, tag = 'scoped memory for tpu_custom_call.1']
    #allocation8 [shape = 'u8[4096]{0}', space=vmem, size = 0x1000, scoped, tag = 'input window, operand 1, single buffered']
    #allocation9 [shape = 's32[1]{0}', space=sflag, size = 0x4, scoped, tag = 'scoped memory for tpu_custom_call.1']
    #allocation10 [shape = 'u8[4096]{0}', space=vmem, size = 0x1000, scoped, tag = 'input window, operand 2, single buffered']
    #allocation11 [shape = 'u8[512]{0}', space=smem, size = 0x200, scoped, tag = 'output window, operand 0, single buffered']
    %8 = vsyncpa [#allocation6], 0
    %9 = vsyncpa [#allocation9], 0
    %10 = vsyncpa [#allocation7], 0
    // Predicated region
    $region2: #{tpu_custom_call.1} parent=1 // pred_check
      _
    $region3: #{tpu_custom_call.1} parent=1 // pred_check_branch
      %12 = sbr.rel (0) target = $region5
    $region4: #{tpu_custom_call.1} parent=1 // pred_region
      %s14 = ssub.s32 128, 128
      %15 = vsyncadd [#allocation6], %s14
      %s17 = sshll.u32 [#allocation5], 4
      %s18 = int_to_ptr.vmem [resolvable:$true] %s17
      %20 = dma.hbm_to_vmem [thread:$0]  %s0, 128, %s18, [#allocation6]
    $region5: #{tpu_custom_call.1} parent=1 // pred_fallthru
      _
    // Predicated region
    $region6: #{tpu_custom_call.1} parent=1 // pred_check
      _
    $region7: #{tpu_custom_call.1} parent=1 // pred_check_branch
      %22 = sbr.rel (0) target = $region9
    $region8: #{tpu_custom_call.1} parent=1 // pred_region
      %s24 = ssub.s32 128, 128
      %25 = vsyncadd [#allocation9], %s24
      %s27 = sshll.u32 [#allocation8], 4
      %s28 = int_to_ptr.vmem [resolvable:$true] %s27
      %30 = dma.hbm_to_vmem [thread:$0]  %s1, 128, %s28, [#allocation9]
    $region9: #{tpu_custom_call.1} parent=1 // pred_fallthru
      _
    // Predicated region
    $region10: #{tpu_custom_call.1} parent=1 // pred_check
      _
    $region11: #{tpu_custom_call.1} parent=1 // pred_check_branch
      %32 = sbr.rel (0) target = $region13
    $region12: #{tpu_custom_call.1} parent=1 // pred_region
      %s34 = ssub.s32 128, 128
      %35 = vsyncadd [#allocation9], %s34
      %s37 = sshll.u32 [#allocation10], 4
      %s38 = int_to_ptr.vmem [resolvable:$true] %s37
      %40 = dma.hbm_to_vmem [thread:$0]  %s2, 128, %s38, [#allocation9]
    $region13: #{tpu_custom_call.1} parent=1 // pred_fallthru
      _
    // Predicated region
    $region14: #{tpu_custom_call.1} parent=1 // pred_check
      _
    $region15: #{tpu_custom_call.1} parent=1 // pred_check_branch
      %42 = sbr.rel (0) target = $region17
    $region16: #{tpu_custom_call.1} parent=1 // pred_region
      %43 = dma.done [#allocation6], 128
    $region17: #{tpu_custom_call.1} parent=1 // pred_fallthru
      _
    // Predicated region
    $region18: #{tpu_custom_call.1} parent=1 // pred_check
      _
    $region19: #{tpu_custom_call.1} parent=1 // pred_check_branch
      %45 = sbr.rel (0) target = $region21
    $region20: #{tpu_custom_call.1} parent=1 // pred_region
      %46 = dma.done [#allocation9], 128
    $region21: #{tpu_custom_call.1} parent=1 // pred_fallthru
      _
    // Predicated region
    $region22: #{tpu_custom_call.1} parent=1 // pred_check
      _
    $region23: #{tpu_custom_call.1} parent=1 // pred_check_branch
      %48 = sbr.rel (0) target = $region25
    $region24: #{tpu_custom_call.1} parent=1 // pred_region
      %49 = dma.done [#allocation9], 128
    $region25: #{tpu_custom_call.1} parent=1 // pred_fallthru
      _
    %p50 = scmp.eq.s32.totalorder 0, 0
    // Predicated region
    $region26: #{tpu_custom_call.1} parent=1 // pred_check
      %p51 = pneg %p50
    $region27: #{tpu_custom_call.1} parent=1 // pred_check_branch
      %53 = sbr.rel (%p51) target = $region29
    $region28: #{tpu_custom_call.1} parent=1 // pred_region
      %54 = vst [vmem:[#allocation2] sm:$0xff] 0.0
      %55 = vst [vmem:[#allocation2 + $0x8] sm:$0xff] 0.0
      %56 = vst [vmem:[#allocation2 + $0x10] sm:$0xff] 0.0
      %57 = vst [vmem:[#allocation2 + $0x18] sm:$0xff] 0.0
      %58 = vst [vmem:[#allocation2 + $0x20] sm:$0xff] 0.0
      %59 = vst [vmem:[#allocation2 + $0x28] sm:$0xff] 0.0
      %60 = vst [vmem:[#allocation2 + $0x30] sm:$0xff] 0.0
      %61 = vst [vmem:[#allocation2 + $0x38] sm:$0xff] 0.0
      %62 = vst [vmem:[#allocation2 + $0x40] sm:$0xff] 0.0
      %63 = vst [vmem:[#allocation2 + $0x48] sm:$0xff] 0.0
      %64 = vst [vmem:[#allocation3] sm:$0xff] 0.0
      %65 = vst [vmem:[#allocation3 + $0x8] sm:$0xff] 0.0
      %66 = vst [vmem:[#allocation3 + $0x10] sm:$0xff] 0.0
      %67 = vst [vmem:[#allocation3 + $0x18] sm:$0xff] 0.0
      %68 = vst [vmem:[#allocation3 + $0x20] sm:$0xff] 0.0
      %69 = vst [vmem:[#allocation3 + $0x28] sm:$0xff] 0.0
      %70 = vst [vmem:[#allocation3 + $0x30] sm:$0xff] 0.0
      %71 = vst [vmem:[#allocation3 + $0x38] sm:$0xff] 0.0
      %72 = vst [vmem:[#allocation3 + $0x40] sm:$0xff] 0.0
      %73 = vst [vmem:[#allocation3 + $0x48] sm:$0xff] 0.0
      %74 = vst [vmem:[#allocation4] sm:$0xff] 0.0
    $region29: #{tpu_custom_call.1} parent=1 // pred_fallthru
      _
    %v75 = vld [vmem:[#allocation5] sm:$0xff]
    %v76 = vld [vmem:[#allocation8] sm:$0xff]
    %v77 = vld [vmem:[#allocation10] sm:$0xff]
    %v78 = vsub.f32 %v75, %v76
    %v79 = vmul.f32 %v78, %v78
    %v80 = vadd.f32 %v79, 0.0004
    %v81 = vrsqrt.pop %v80
    %v82 = vmul.f32 %v80, %v81
    %v83 = vsub.f32 %v82, 0.02
    %v84 = vand.u32 2147483647, %v78
    %v85 = vmul.f32 %v84, %v81
    %vm86 = vcmp.gt.f32.partialorder %v77, 0.0
    %v87 = vld [vmem:[#allocation4] sm:$0xff]
    %v88 = vadd.f32 %v77, 0.0
    %v89 = vadd.f32 %v87, %v88
    %90 = vst [vmem:[#allocation4] sm:$0xff] %v89
    %vm91 = vcmp.ge.f32.partialorder %v85, 0.1
    %vm92 = vcmp.ge.f32.partialorder %v85, 0.2
    %vm93 = vcmp.ge.f32.partialorder %v85, 0.3
    %vm94 = vcmp.ge.f32.partialorder %v85, 0.4
    %vm95 = vcmp.ge.f32.partialorder %v85, 0.5
    %vm96 = vcmp.ge.f32.partialorder %v85, 0.6
    %vm97 = vcmp.ge.f32.partialorder %v85, 0.7
    %vm98 = vcmp.ge.f32.partialorder %v85, 0.8
    %vm99 = vcmp.ge.f32.partialorder %v85, 0.9
    %vm100 = vmxor %vm91, 1
    %vm101 = vmand %vm86, %vm100
    %v102 = vsel %vm101, 1, 0
    %v103 = vcvt.s32.f32 %v102
    %v104 = vld [vmem:[#allocation2] sm:$0xff]
    %v105 = vadd.f32 %v103, 0.0
    %v106 = vadd.f32 %v104, %v105
    %107 = vst [vmem:[#allocation2] sm:$0xff] %v106
    %v108 = vld [vmem:[#allocation3] sm:$0xff]
    %v109 = vmul.f32 %v83, %v103
    %v110 = vadd.f32 %v109, 0.0
    %v111 = vadd.f32 %v108, %v110
    %112 = vst [vmem:[#allocation3] sm:$0xff] %v111
    %vm113 = vmand %vm86, %vm91
    %vm114 = vmxor %vm92, 1
    %vm115 = vmand %vm113, %vm114
    %v116 = vsel %vm115, 1, 0
    %v117 = vcvt.s32.f32 %v116
    %s118 = scalar_lea.vmem [#allocation2], 8
    %v119 = vld [vmem:[%s118] sm:$0xff]
    %v120 = vadd.f32 %v117, 0.0
    %v121 = vadd.f32 %v119, %v120
    %122 = vst [vmem:[%s118] sm:$0xff] %v121
    %s123 = scalar_lea.vmem [#allocation3], 8
    %v124 = vld [vmem:[%s123] sm:$0xff]
    %v125 = vmul.f32 %v83, %v117
    %v126 = vadd.f32 %v125, 0.0
    %v127 = vadd.f32 %v124, %v126
    %128 = vst [vmem:[%s123] sm:$0xff] %v127
    %vm129 = vmand %vm86, %vm92
    %vm130 = vmxor %vm93, 1
    %vm131 = vmand %vm129, %vm130
    %v132 = vsel %vm131, 1, 0
    %v133 = vcvt.s32.f32 %v132
    %s134 = scalar_lea.vmem [#allocation2], 16
    %v135 = vld [vmem:[%s134] sm:$0xff]
    %v136 = vadd.f32 %v133, 0.0
    %v137 = vadd.f32 %v135, %v136
    %138 = vst [vmem:[%s134] sm:$0xff] %v137
    %s139 = scalar_lea.vmem [#allocation3], 16
    %v140 = vld [vmem:[%s139] sm:$0xff]
    %v141 = vmul.f32 %v83, %v133
    %v142 = vadd.f32 %v141, 0.0
    %v143 = vadd.f32 %v140, %v142
    %144 = vst [vmem:[%s139] sm:$0xff] %v143
    %vm145 = vmand %vm86, %vm93
    %vm146 = vmxor %vm94, 1
    %vm147 = vmand %vm145, %vm146
    %v148 = vsel %vm147, 1, 0
    %v149 = vcvt.s32.f32 %v148
    %s150 = scalar_lea.vmem [#allocation2], 24
    %v151 = vld [vmem:[%s150] sm:$0xff]
    %v152 = vadd.f32 %v149, 0.0
    %v153 = vadd.f32 %v151, %v152
    %154 = vst [vmem:[%s150] sm:$0xff] %v153
    %s155 = scalar_lea.vmem [#allocation3], 24
    %v156 = vld [vmem:[%s155] sm:$0xff]
    %v157 = vmul.f32 %v83, %v149
    %v158 = vadd.f32 %v157, 0.0
    %v159 = vadd.f32 %v156, %v158
    %160 = vst [vmem:[%s155] sm:$0xff] %v159
    %vm161 = vmand %vm86, %vm94
    %vm162 = vmxor %vm95, 1
    %vm163 = vmand %vm161, %vm162
    %v164 = vsel %vm163, 1, 0
    %v165 = vcvt.s32.f32 %v164
    %s166 = scalar_lea.vmem [#allocation2], 32
    %v167 = vld [vmem:[%s166] sm:$0xff]
    %v168 = vadd.f32 %v165, 0.0
    %v169 = vadd.f32 %v167, %v168
    %170 = vst [vmem:[%s166] sm:$0xff] %v169
    %s171 = scalar_lea.vmem [#allocation3], 32
    %v172 = vld [vmem:[%s171] sm:$0xff]
    %v173 = vmul.f32 %v83, %v165
    %v174 = vadd.f32 %v173, 0.0
    %v175 = vadd.f32 %v172, %v174
    %176 = vst [vmem:[%s171] sm:$0xff] %v175
    %vm177 = vmand %vm86, %vm95
    %vm178 = vmxor %vm96, 1
    %vm179 = vmand %vm177, %vm178
    %v180 = vsel %vm179, 1, 0
    %v181 = vcvt.s32.f32 %v180
    %s182 = scalar_lea.vmem [#allocation2], 40
    %v183 = vld [vmem:[%s182] sm:$0xff]
    %v184 = vadd.f32 %v181, 0.0
    %v185 = vadd.f32 %v183, %v184
    %186 = vst [vmem:[%s182] sm:$0xff] %v185
    %s187 = scalar_lea.vmem [#allocation3], 40
    %v188 = vld [vmem:[%s187] sm:$0xff]
    %v189 = vmul.f32 %v83, %v181
    %v190 = vadd.f32 %v189, 0.0
    %v191 = vadd.f32 %v188, %v190
    %192 = vst [vmem:[%s187] sm:$0xff] %v191
    %vm193 = vmand %vm86, %vm96
    %vm194 = vmxor %vm97, 1
    %vm195 = vmand %vm193, %vm194
    %v196 = vsel %vm195, 1, 0
    %v197 = vcvt.s32.f32 %v196
    %s198 = scalar_lea.vmem [#allocation2], 48
    %v199 = vld [vmem:[%s198] sm:$0xff]
    %v200 = vadd.f32 %v197, 0.0
    %v201 = vadd.f32 %v199, %v200
    %202 = vst [vmem:[%s198] sm:$0xff] %v201
    %s203 = scalar_lea.vmem [#allocation3], 48
    %v204 = vld [vmem:[%s203] sm:$0xff]
    %v205 = vmul.f32 %v83, %v197
    %v206 = vadd.f32 %v205, 0.0
    %v207 = vadd.f32 %v204, %v206
    %208 = vst [vmem:[%s203] sm:$0xff] %v207
    %vm209 = vmand %vm86, %vm97
    %vm210 = vmxor %vm98, 1
    %vm211 = vmand %vm209, %vm210
    %v212 = vsel %vm211, 1, 0
    %v213 = vcvt.s32.f32 %v212
    %s214 = scalar_lea.vmem [#allocation2], 56
    %v215 = vld [vmem:[%s214] sm:$0xff]
    %v216 = vadd.f32 %v213, 0.0
    %v217 = vadd.f32 %v215, %v216
    %218 = vst [vmem:[%s214] sm:$0xff] %v217
    %s219 = scalar_lea.vmem [#allocation3], 56
    %v220 = vld [vmem:[%s219] sm:$0xff]
    %v221 = vmul.f32 %v83, %v213
    %v222 = vadd.f32 %v221, 0.0
    %v223 = vadd.f32 %v220, %v222
    %224 = vst [vmem:[%s219] sm:$0xff] %v223
    %vm225 = vmand %vm86, %vm98
    %vm226 = vmxor %vm99, 1
    %vm227 = vmand %vm225, %vm226
    %v228 = vsel %vm227, 1, 0
    %v229 = vcvt.s32.f32 %v228
    %s230 = scalar_lea.vmem [#allocation2], 64
    %v231 = vld [vmem:[%s230] sm:$0xff]
    %v232 = vadd.f32 %v229, 0.0
    %v233 = vadd.f32 %v231, %v232
    %234 = vst [vmem:[%s230] sm:$0xff] %v233
    %s235 = scalar_lea.vmem [#allocation3], 64
    %v236 = vld [vmem:[%s235] sm:$0xff]
    %v237 = vmul.f32 %v83, %v229
    %v238 = vadd.f32 %v237, 0.0
    %v239 = vadd.f32 %v236, %v238
    %240 = vst [vmem:[%s235] sm:$0xff] %v239
    %vm241 = vmand %vm86, %vm99
    %v242 = vsel %vm241, 1, 0
    %v243 = vcvt.s32.f32 %v242
    %s244 = scalar_lea.vmem [#allocation2], 72
    %v245 = vld [vmem:[%s244] sm:$0xff]
    %v246 = vadd.f32 %v243, 0.0
    %v247 = vadd.f32 %v245, %v246
    %248 = vst [vmem:[%s244] sm:$0xff] %v247
    %s249 = scalar_lea.vmem [#allocation3], 72
    %v250 = vld [vmem:[%s249] sm:$0xff]
    %v251 = vmul.f32 %v83, %v243
    %v252 = vadd.f32 %v251, 0.0
    %v253 = vadd.f32 %v250, %v252
    %254 = vst [vmem:[%s249] sm:$0xff] %v253
    // Predicated region
    $region30: #{tpu_custom_call.1} parent=1 // pred_check
      %p255 = pneg %p50
    $region31: #{tpu_custom_call.1} parent=1 // pred_check_branch
      %257 = sbr.rel (%p255) target = $region33
    $region32: #{tpu_custom_call.1} parent=1 // pred_region
      %v258 = vld [vmem:[#allocation4] sm:$0xff]
      %259 = vadd.xlane.f32.xlu0 %v258
      %v260 = vpop.xlane.xlu0 %259
      %v261 = vrot.slane %v260, 4
      %v262 = vadd.f32 %v260, %v261
      %v263 = vrot.slane %v262, 2
      %v264 = vadd.f32 %v262, %v263
      %v265 = vrot.slane %v264, 1
      %v266 = vadd.f32 %v264, %v265
      %s267 = vtos %v266
      %s268 = smax.f32 %s267, 1.0
      %v269 = vld [vmem:[#allocation2] sm:$0xff]
      %270 = vadd.xlane.f32.xlu0 %v269
      %v271 = vpop.xlane.xlu0 %270
      %v272 = vrot.slane %v271, 4
      %v273 = vadd.f32 %v271, %v272
      %v274 = vrot.slane %v273, 2
      %v275 = vadd.f32 %v273, %v274
      %v276 = vrot.slane %v275, 1
      %v277 = vadd.f32 %v275, %v276
      %s278 = vtos %v277
      %v279 = vld [vmem:[#allocation3] sm:$0xff]
      %280 = vadd.xlane.f32.xlu0 %v279
      %v281 = vpop.xlane.xlu0 %280
      %v282 = vrot.slane %v281, 4
      %v283 = vadd.f32 %v281, %v282
      %v284 = vrot.slane %v283, 2
      %v285 = vadd.f32 %v283, %v284
      %v286 = vrot.slane %v285, 1
      %v287 = vadd.f32 %v285, %v286
      %s288 = vtos %v287
      %p289 = scmp.gt.f32.partialorder %s278, 0.0
      %s290 = scalar_select %p289, 1.0, 0.0
      %s291 = sadd.f32 %s290, 0.0
      %s292 = smax.f32 %s278, 1.0
      %v293 = vstv %s292
      %v294 = vrcp.pop %v293
      %s295 = vtos %v294
      %s296 = smul.f32 %s268, %s295
      %s297 = smul.f32 %s296, %s288
      %s298 = scalar_select %p289, %s297, 0.0
      %s299 = sadd.f32 %s298, 0.0
      %v300 = vld [vmem:[%s118] sm:$0xff]
      %301 = vadd.xlane.f32.xlu0 %v300
      %v302 = vpop.xlane.xlu0 %301
      %v303 = vrot.slane %v302, 4
      %v304 = vadd.f32 %v302, %v303
      %v305 = vrot.slane %v304, 2
      %v306 = vadd.f32 %v304, %v305
      %v307 = vrot.slane %v306, 1
      %v308 = vadd.f32 %v306, %v307
      %s309 = vtos %v308
      %v310 = vld [vmem:[%s123] sm:$0xff]
      %311 = vadd.xlane.f32.xlu0 %v310
      %v312 = vpop.xlane.xlu0 %311
      %v313 = vrot.slane %v312, 4
      %v314 = vadd.f32 %v312, %v313
      %v315 = vrot.slane %v314, 2
      %v316 = vadd.f32 %v314, %v315
      %v317 = vrot.slane %v316, 1
      %v318 = vadd.f32 %v316, %v317
      %s319 = vtos %v318
      %p320 = scmp.gt.f32.partialorder %s309, 0.0
      %s321 = scalar_select %p320, 1.0, 0.0
      %s322 = sadd.f32 %s291, %s321
      %s323 = smax.f32 %s309, 1.0
      %v324 = vstv %s323
      %v325 = vrcp.pop %v324
      %s326 = vtos %v325
      %s327 = smul.f32 %s268, %s326
      %s328 = smul.f32 %s327, %s319
      %s329 = scalar_select %p320, %s328, 0.0
      %s330 = sadd.f32 %s299, %s329
      %v331 = vld [vmem:[%s134] sm:$0xff]
      %332 = vadd.xlane.f32.xlu0 %v331
      %v333 = vpop.xlane.xlu0 %332
      %v334 = vrot.slane %v333, 4
      %v335 = vadd.f32 %v333, %v334
      %v336 = vrot.slane %v335, 2
      %v337 = vadd.f32 %v335, %v336
      %v338 = vrot.slane %v337, 1
      %v339 = vadd.f32 %v337, %v338
      %s340 = vtos %v339
      %v341 = vld [vmem:[%s139] sm:$0xff]
      %342 = vadd.xlane.f32.xlu0 %v341
      %v343 = vpop.xlane.xlu0 %342
      %v344 = vrot.slane %v343, 4
      %v345 = vadd.f32 %v343, %v344
      %v346 = vrot.slane %v345, 2
      %v347 = vadd.f32 %v345, %v346
      %v348 = vrot.slane %v347, 1
      %v349 = vadd.f32 %v347, %v348
      %s350 = vtos %v349
      %p351 = scmp.gt.f32.partialorder %s340, 0.0
      %s352 = scalar_select %p351, 1.0, 0.0
      %s353 = sadd.f32 %s322, %s352
      %s354 = smax.f32 %s340, 1.0
      %v355 = vstv %s354
      %v356 = vrcp.pop %v355
      %s357 = vtos %v356
      %s358 = smul.f32 %s268, %s357
      %s359 = smul.f32 %s358, %s350
      %s360 = scalar_select %p351, %s359, 0.0
      %s361 = sadd.f32 %s330, %s360
      %v362 = vld [vmem:[%s150] sm:$0xff]
      %363 = vadd.xlane.f32.xlu0 %v362
      %v364 = vpop.xlane.xlu0 %363
      %v365 = vrot.slane %v364, 4
      %v366 = vadd.f32 %v364, %v365
      %v367 = vrot.slane %v366, 2
      %v368 = vadd.f32 %v366, %v367
      %v369 = vrot.slane %v368, 1
      %v370 = vadd.f32 %v368, %v369
      %s371 = vtos %v370
      %v372 = vld [vmem:[%s155] sm:$0xff]
      %373 = vadd.xlane.f32.xlu0 %v372
      %v374 = vpop.xlane.xlu0 %373
      %v375 = vrot.slane %v374, 4
      %v376 = vadd.f32 %v374, %v375
      %v377 = vrot.slane %v376, 2
      %v378 = vadd.f32 %v376, %v377
      %v379 = vrot.slane %v378, 1
      %v380 = vadd.f32 %v378, %v379
      %s381 = vtos %v380
      %p382 = scmp.gt.f32.partialorder %s371, 0.0
      %s383 = scalar_select %p382, 1.0, 0.0
      %s384 = sadd.f32 %s353, %s383
      %s385 = smax.f32 %s371, 1.0
      %v386 = vstv %s385
      %v387 = vrcp.pop %v386
      %s388 = vtos %v387
      %s389 = smul.f32 %s268, %s388
      %s390 = smul.f32 %s389, %s381
      %s391 = scalar_select %p382, %s390, 0.0
      %s392 = sadd.f32 %s361, %s391
      %v393 = vld [vmem:[%s166] sm:$0xff]
      %394 = vadd.xlane.f32.xlu0 %v393
      %v395 = vpop.xlane.xlu0 %394
      %v396 = vrot.slane %v395, 4
      %v397 = vadd.f32 %v395, %v396
      %v398 = vrot.slane %v397, 2
      %v399 = vadd.f32 %v397, %v398
      %v400 = vrot.slane %v399, 1
      %v401 = vadd.f32 %v399, %v400
      %s402 = vtos %v401
      %v403 = vld [vmem:[%s171] sm:$0xff]
      %404 = vadd.xlane.f32.xlu0 %v403
      %v405 = vpop.xlane.xlu0 %404
      %v406 = vrot.slane %v405, 4
      %v407 = vadd.f32 %v405, %v406
      %v408 = vrot.slane %v407, 2
      %v409 = vadd.f32 %v407, %v408
      %v410 = vrot.slane %v409, 1
      %v411 = vadd.f32 %v409, %v410
      %s412 = vtos %v411
      %p413 = scmp.gt.f32.partialorder %s402, 0.0
      %s414 = scalar_select %p413, 1.0, 0.0
      %s415 = sadd.f32 %s384, %s414
      %s416 = smax.f32 %s402, 1.0
      %v417 = vstv %s416
      %v418 = vrcp.pop %v417
      %s419 = vtos %v418
      %s420 = smul.f32 %s268, %s419
      %s421 = smul.f32 %s420, %s412
      %s422 = scalar_select %p413, %s421, 0.0
      %s423 = sadd.f32 %s392, %s422
      %v424 = vld [vmem:[%s182] sm:$0xff]
      %425 = vadd.xlane.f32.xlu0 %v424
      %v426 = vpop.xlane.xlu0 %425
      %v427 = vrot.slane %v426, 4
      %v428 = vadd.f32 %v426, %v427
      %v429 = vrot.slane %v428, 2
      %v430 = vadd.f32 %v428, %v429
      %v431 = vrot.slane %v430, 1
      %v432 = vadd.f32 %v430, %v431
      %s433 = vtos %v432
      %v434 = vld [vmem:[%s187] sm:$0xff]
      %435 = vadd.xlane.f32.xlu0 %v434
      %v436 = vpop.xlane.xlu0 %435
      %v437 = vrot.slane %v436, 4
      %v438 = vadd.f32 %v436, %v437
      %v439 = vrot.slane %v438, 2
      %v440 = vadd.f32 %v438, %v439
      %v441 = vrot.slane %v440, 1
      %v442 = vadd.f32 %v440, %v441
      %s443 = vtos %v442
      %p444 = scmp.gt.f32.partialorder %s433, 0.0
      %s445 = scalar_select %p444, 1.0, 0.0
      %s446 = sadd.f32 %s415, %s445
      %s447 = smax.f32 %s433, 1.0
      %v448 = vstv %s447
      %v449 = vrcp.pop %v448
      %s450 = vtos %v449
      %s451 = smul.f32 %s268, %s450
      %s452 = smul.f32 %s451, %s443
      %s453 = scalar_select %p444, %s452, 0.0
      %s454 = sadd.f32 %s423, %s453
      %v455 = vld [vmem:[%s198] sm:$0xff]
      %456 = vadd.xlane.f32.xlu0 %v455
      %v457 = vpop.xlane.xlu0 %456
      %v458 = vrot.slane %v457, 4
      %v459 = vadd.f32 %v457, %v458
      %v460 = vrot.slane %v459, 2
      %v461 = vadd.f32 %v459, %v460
      %v462 = vrot.slane %v461, 1
      %v463 = vadd.f32 %v461, %v462
      %s464 = vtos %v463
      %v465 = vld [vmem:[%s203] sm:$0xff]
      %466 = vadd.xlane.f32.xlu0 %v465
      %v467 = vpop.xlane.xlu0 %466
      %v468 = vrot.slane %v467, 4
      %v469 = vadd.f32 %v467, %v468
      %v470 = vrot.slane %v469, 2
      %v471 = vadd.f32 %v469, %v470
      %v472 = vrot.slane %v471, 1
      %v473 = vadd.f32 %v471, %v472
      %s474 = vtos %v473
      %p475 = scmp.gt.f32.partialorder %s464, 0.0
      %s476 = scalar_select %p475, 1.0, 0.0
      %s477 = sadd.f32 %s446, %s476
      %s478 = smax.f32 %s464, 1.0
      %v479 = vstv %s478
      %v480 = vrcp.pop %v479
      %s481 = vtos %v480
      %s482 = smul.f32 %s268, %s481
      %s483 = smul.f32 %s482, %s474
      %s484 = scalar_select %p475, %s483, 0.0
      %s485 = sadd.f32 %s454, %s484
      %v486 = vld [vmem:[%s214] sm:$0xff]
      %487 = vadd.xlane.f32.xlu0 %v486
      %v488 = vpop.xlane.xlu0 %487
      %v489 = vrot.slane %v488, 4
      %v490 = vadd.f32 %v488, %v489
      %v491 = vrot.slane %v490, 2
      %v492 = vadd.f32 %v490, %v491
      %v493 = vrot.slane %v492, 1
      %v494 = vadd.f32 %v492, %v493
      %s495 = vtos %v494
      %v496 = vld [vmem:[%s219] sm:$0xff]
      %497 = vadd.xlane.f32.xlu0 %v496
      %v498 = vpop.xlane.xlu0 %497
      %v499 = vrot.slane %v498, 4
      %v500 = vadd.f32 %v498, %v499
      %v501 = vrot.slane %v500, 2
      %v502 = vadd.f32 %v500, %v501
      %v503 = vrot.slane %v502, 1
      %v504 = vadd.f32 %v502, %v503
      %s505 = vtos %v504
      %p506 = scmp.gt.f32.partialorder %s495, 0.0
      %s507 = scalar_select %p506, 1.0, 0.0
      %s508 = sadd.f32 %s477, %s507
      %s509 = smax.f32 %s495, 1.0
      %v510 = vstv %s509
      %v511 = vrcp.pop %v510
      %s512 = vtos %v511
      %s513 = smul.f32 %s268, %s512
      %s514 = smul.f32 %s513, %s505
      %s515 = scalar_select %p506, %s514, 0.0
      %s516 = sadd.f32 %s485, %s515
      %v517 = vld [vmem:[%s230] sm:$0xff]
      %518 = vadd.xlane.f32.xlu0 %v517
      %v519 = vpop.xlane.xlu0 %518
      %v520 = vrot.slane %v519, 4
      %v521 = vadd.f32 %v519, %v520
      %v522 = vrot.slane %v521, 2
      %v523 = vadd.f32 %v521, %v522
      %v524 = vrot.slane %v523, 1
      %v525 = vadd.f32 %v523, %v524
      %s526 = vtos %v525
      %v527 = vld [vmem:[%s235] sm:$0xff]
      %528 = vadd.xlane.f32.xlu0 %v527
      %v529 = vpop.xlane.xlu0 %528
      %v530 = vrot.slane %v529, 4
      %v531 = vadd.f32 %v529, %v530
      %v532 = vrot.slane %v531, 2
      %v533 = vadd.f32 %v531, %v532
      %v534 = vrot.slane %v533, 1
      %v535 = vadd.f32 %v533, %v534
      %s536 = vtos %v535
      %p537 = scmp.gt.f32.partialorder %s526, 0.0
      %s538 = scalar_select %p537, 1.0, 0.0
      %s539 = sadd.f32 %s508, %s538
      %s540 = smax.f32 %s526, 1.0
      %v541 = vstv %s540
      %v542 = vrcp.pop %v541
      %s543 = vtos %v542
      %s544 = smul.f32 %s268, %s543
      %s545 = smul.f32 %s544, %s536
      %s546 = scalar_select %p537, %s545, 0.0
      %s547 = sadd.f32 %s516, %s546
      %v548 = vld [vmem:[%s244] sm:$0xff]
      %549 = vadd.xlane.f32.xlu0 %v548
      %v550 = vpop.xlane.xlu0 %549
      %v551 = vrot.slane %v550, 4
      %v552 = vadd.f32 %v550, %v551
      %v553 = vrot.slane %v552, 2
      %v554 = vadd.f32 %v552, %v553
      %v555 = vrot.slane %v554, 1
      %v556 = vadd.f32 %v554, %v555
      %s557 = vtos %v556
      %v558 = vld [vmem:[%s249] sm:$0xff]
      %559 = vadd.xlane.f32.xlu0 %v558
      %v560 = vpop.xlane.xlu0 %559
      %v561 = vrot.slane %v560, 4
      %v562 = vadd.f32 %v560, %v561
      %v563 = vrot.slane %v562, 2
      %v564 = vadd.f32 %v562, %v563
      %v565 = vrot.slane %v564, 1
      %v566 = vadd.f32 %v564, %v565
      %s567 = vtos %v566
      %p568 = scmp.gt.f32.partialorder %s557, 0.0
      %s569 = scalar_select %p568, 1.0, 0.0
      %s570 = sadd.f32 %s539, %s569
      %s571 = smax.f32 %s557, 1.0
      %v572 = vstv %s571
      %v573 = vrcp.pop %v572
      %s574 = vtos %v573
      %s575 = smul.f32 %s268, %s574
      %s576 = smul.f32 %s575, %s567
      %s577 = scalar_select %p568, %s576, 0.0
      %s578 = sadd.f32 %s547, %s577
      %s579 = smax.f32 %s570, 1.0
      %v580 = vstv %s579
      %v581 = vrcp.pop %v580
      %s582 = vtos %v581
      %s583 = smul.f32 %s578, %s582
      %v584 = vstv %s268
      %v585 = vrcp.pop %v584
      %s586 = vtos %v585
      %s587 = smul.f32 %s583, %s586
      %s588 = scalar_lea.smem [#allocation11], 0
      %589 = sst [smem:[%s588]] %s587
    $region33: #{tpu_custom_call.1} parent=1 // pred_fallthru
      _
    // Predicated region
    $region34: #{tpu_custom_call.1} parent=1 // pred_check
      _
    $region35: #{tpu_custom_call.1} parent=1 // pred_check_branch
      %591 = sbr.rel (0) target = $region37
    $region36: #{tpu_custom_call.1} parent=1 // pred_region
      %s593 = ssub.s32 16, 16
      %594 = vsyncadd [#allocation7], %s593
      %597 = dma.smem_to_hbm [#allocation11], 16, %s3, [#allocation7]
    $region37: #{tpu_custom_call.1} parent=1 // pred_fallthru
      _
    // Predicated region
    $region38: #{tpu_custom_call.1} parent=1 // pred_check
      _
    $region39: #{tpu_custom_call.1} parent=1 // pred_check_branch
      %599 = sbr.rel (0) target = $region41
    $region40: #{tpu_custom_call.1} parent=1 // pred_region
      %600 = dma.done [#allocation7], 16
    $region41: #{tpu_custom_call.1} parent=1 // pred_fallthru
      _
    %601 = sfence
    %602 = vsyncpa [#allocation6], 1
    %603 = vsyncpa [#allocation9], 1
    %604 = vsyncpa [#allocation7], 1

</llo_original>
